<compile_context>
chip_gen: v7x
topology: tpu7x:2x2x1
jax: 0.10.0
libtpu: 0.0.40
codegen_flags: <defaults>
</compile_context>

<pallas_src>
import functools

import jax
import jax.numpy as jnp
from jax import lax
from jax.experimental import pallas as pl
from jax.experimental.pallas import tpu as pltpu

_LANE = 128                 # lane width: last dim of every block
_ROW_QUANTUM = 16           # sublane rows per bf16 tile (also fine for f32)
_HW_TILE_TARGET = 512       # rows; amortizes ~0.35us/step and hits DMA roofline
_COUT_TILE_TARGET = 512     # lanes; dense-branch Cout tile (weights + megacore)


def _round_up(x, m):
    return (x + m - 1) // m * m


def _vmem_capacity_bytes():
    """Physical VMEM of the attached TPU; conservative 64 MiB (v7x) fallback."""
    try:
        cap = getattr(pltpu.get_tpu_info(), "vmem_capacity_bytes", None)
        if cap:
            return int(cap)
    except Exception:
        pass
    return 64 << 20


@functools.lru_cache(maxsize=None)
def _buffered_pipeline_supported():
    """Probe once whether pipeline_mode=pl.Buffered(1) compiles & is correct."""
    try:
        def k(a_ref, w_ref, o_ref):
            o_ref[...] = a_ref[...] + w_ref[...]

        a = jnp.arange(16 * 128, dtype=jnp.float32).reshape(16, 128)
        w = jnp.ones((8, 128), jnp.float32)
        out = pl.pallas_call(
            k,
            out_shape=jax.ShapeDtypeStruct((16, 128), jnp.float32),
            grid=(2,),
            in_specs=[
                pl.BlockSpec((8, 128), lambda i: (i, 0)),
                pl.BlockSpec((8, 128), lambda i: (0, 0),
                             pipeline_mode=pl.Buffered(1)),
            ],
            out_specs=pl.BlockSpec((8, 128), lambda i: (i, 0)),
        )(a, w)
        return bool(jnp.allclose(jax.block_until_ready(out), a + 1.0))
    except Exception:
        return False


def _weight_spec(shape, index_map, mode):
    """BlockSpec for a weight operand, optionally single-buffered."""
    if mode is None:
        return pl.BlockSpec(shape, index_map)
    return pl.BlockSpec(shape, index_map, pipeline_mode=mode)


# ---------------------------------------------------------------------------
# Kernels
# ---------------------------------------------------------------------------
def _temporal_taps(x_ref, w1_ref, d_out, t, sd):
    """(3,1,1) temporal conv as tap-wise big-M MXU matmuls.

    x_ref : (1, D_in, T, Cin_p)   bf16
    w1_ref: (3, Cin_p, Cout_t)    bf16
    returns (D_out*T, Cout_t) f32.
    """
    cin = x_ref.shape[-1]
    if sd == 1:
        # Fold D_out into the matmul M dimension: each tap's RHS is streamed
        # through the MXU exactly once per grid step.  T is a multiple of 16 so
        # the (d_out, T, cin) -> (d_out*T, cin) collapse is layout-free.
        def tap(kd):
            lhs = x_ref[0, kd:kd + d_out].reshape(d_out * t, cin)
            return jnp.dot(lhs, w1_ref[kd], preferred_element_type=jnp.float32)

        acc = tap(0)               # init with the first product (no zeros+add)
        acc = acc + tap(1)
        acc = acc + tap(2)
        return acc
    # Generic temporal-stride fallback (SlowPath always uses sd == 1).
    rows = []
    for d in range(d_out):         # static unroll: D_out is small (<= 8)
        a = jnp.dot(x_ref[0, d * sd + 0], w1_ref[0],
                    preferred_element_type=jnp.float32)
        a = a + jnp.dot(x_ref[0, d * sd + 1], w1_ref[1],
                        preferred_element_type=jnp.float32)
        a = a + jnp.dot(x_ref[0, d * sd + 2], w1_ref[2],
                        preferred_element_type=jnp.float32)
        rows.append(a)
    return jnp.concatenate(rows, axis=0)


def _dense_conv_kernel(x_ref, w1_ref, scale_ref, shift_ref, o_ref, *,
                       sd, final_relu):
    """Plain branch: dense (3,1,1) conv (bias=False) + folded BN [+ ReLU]."""
    d_out, t, cout = o_ref.shape[1], o_ref.shape[2], o_ref.shape[3]
    acc = _temporal_taps(x_ref, w1_ref, d_out, t, sd)
    acc = acc * scale_ref[0] + shift_ref[0]          # single f32 epilogue (v5e-safe)
    if final_relu:
        acc = jnp.maximum(acc, 0.0)
    o_ref[0] = acc.reshape(d_out, t, cout).astype(o_ref.dtype)   # lane-dense store


def _grouped_conv_kernel(x_ref, w1_ref, b1_ref, w2_ref, scale_ref, shift_ref,
                         o_ref, *, sd, final_relu):
    """Grouped branch: grouped (3,1,1) conv (+bias) + ReLU + (1,1,1) conv + BN [+ ReLU].

    The grouped conv is expanded in-kernel on the MXU via densified block-sparse
    per-tap weights (w1_ref), so x arrives in its natural Cin layout -- no HBM
    gather / slot expansion in the wrapper.
    """
    d_out, t, cout = o_ref.shape[1], o_ref.shape[2], o_ref.shape[3]
    mid = _temporal_taps(x_ref, w1_ref, d_out, t, sd)            # grouped conv
    mid = jnp.maximum(mid + b1_ref[0], 0.0).astype(jnp.bfloat16)  # bias + mid ReLU
    acc = jnp.dot(mid, w2_ref[...],                               # (1,1,1) conv,
                  preferred_element_type=jnp.float32)             # one big-M matmul
    acc = acc * scale_ref[0] + shift_ref[0]
    if final_relu:
        acc = jnp.maximum(acc, 0.0)
    o_ref[0] = acc.reshape(d_out, t, cout).astype(o_ref.dtype)


# ---------------------------------------------------------------------------
# Parameters (PyTorch-shaped)
# ---------------------------------------------------------------------------
def init_params(key, in_channels, out_channels, is_group_conv):
    """Deterministic params with the PyTorch module's shapes / semantics."""
    keys = jax.random.split(key, 7)
    grouped = is_group_conv and (in_channels % out_channels == 0
                                 or out_channels % in_channels == 0)
    p = dict(grouped=grouped, in_channels=in_channels, out_channels=out_channels)
    if grouped:
        groups = min(in_channels, out_channels)
        p["groups"] = groups
        # Conv3d(3,1,1, groups, bias=True): weight (Cout, Cin//groups, 3, 1, 1)
        p["w1_pt"] = 0.1 * jax.random.normal(
            keys[0], (out_channels, in_channels // groups, 3), jnp.float32)
        p["b1"] = 0.1 * jax.random.normal(keys[1], (out_channels,), jnp.float32)
        # Conv3d(1,1,1, bias=False): weight (Cout, Cout, 1, 1, 1)
        p["w2_pt"] = 0.1 * jax.random.normal(
            keys[2], (out_channels, out_channels), jnp.float32)
    else:
        p["groups"] = 1
        # Conv3d(3,1,1, bias=False): weight (Cout, Cin, 3, 1, 1)
        p["w1_pt"] = 0.1 * jax.random.normal(
            keys[0], (out_channels, in_channels, 3), jnp.float32)
    # BatchNorm3d folded in eval mode to per-channel scale/shift.
    gamma = 1.0 + 0.1 * jax.random.normal(keys[3], (out_channels,), jnp.float32)
    beta = 0.1 * jax.random.normal(keys[4], (out_channels,), jnp.float32)
    mean = 0.1 * jax.random.normal(keys[5], (out_channels,), jnp.float32)
    var = jnp.abs(jax.random.normal(keys[6], (out_channels,), jnp.float32)) + 1.0
    scale = gamma / jnp.sqrt(var + 1e-5)
    p["bn_scale"] = scale
    p["bn_shift"] = beta - mean * scale
    return p


# ---------------------------------------------------------------------------
# Forward (channels-last core + NCDHW boundary shim)
# ---------------------------------------------------------------------------
def conv3x1x1_forward_channels_last(x_cl, p, *, stride=(1, 1, 1),
                                    padding=(1, 0, 0), is_relu=True,
                                    out_dtype=jnp.bfloat16):
    """x_cl: (N, D, H, W, Cin) channels-last.  Returns (N, D_out, H_out, W_out, Cout).

    For chained blocks, keep activations channels-last / lane-padded / bf16 so
    the pad/astype glue below becomes a no-op (the grouped-branch HBM gather of
    the previous revision no longer exists at all).
    """
    N, D, H, W, Cin = x_cl.shape
    Cout = p["out_channels"]
    assert Cin == p["in_channels"]
    sd, sh, sw = stride
    pd, ph, pw = padding
    D_out = (D + 2 * pd - 3) // sd + 1
    H_out = (H + 2 * ph - 1) // sh + 1
    W_out = (W + 2 * pw - 1) // sw + 1
    HW = H_out * W_out
    D_in = D + 2 * pd
    grouped = p["grouped"]

    cin_p = _round_up(Cin, _LANE)       # lane-dense input channels
    cout_p = _round_up(Cout, _LANE)     # lane-dense output channels (dense vst)
    out_bytes = jnp.dtype(out_dtype).itemsize

    # ---- Cout tiling (dense branch only): keeps weight blocks small at large
    #      channel counts and gives v7x's 2 TCs parallel grid steps when HW is
    #      a single tile.  Grouped branch: the (1,1,1) conv consumes ALL mid
    #      channels, so a Cout axis would recompute the dominant matmul.
    if grouped or cout_p <= _COUT_TILE_TARGET:
        cout_tile = cout_p
    else:
        cout_tile = next(c for c in (512, 384, 256, 128) if cout_p % c == 0)
    n_cout = cout_p // cout_tile

    # Grid-invariant weights (index map constant) -> single-buffer them.
    weights_const = grouped or n_cout == 1
    use_buffered = weights_const and _buffered_pipeline_supported()
    w_mode = pl.Buffered(1) if use_buffered else None
    w_buf = 1 if use_buffered else 2

    if grouped:
        w_bytes = (3 * cin_p * cout_p * 2 + cout_p * cout_p * 2 + 3 * cout_p * 4)
    else:
        w_bytes = 3 * cin_p * cout_tile * 2 + 2 * cout_tile * 4

    # ---- Generation-aware VMEM sizing (no double counting of buffers). ----
    cap = _vmem_capacity_bytes()
    budget = int(cap * 0.55)            # live blocks incl. double buffers
    limit_cap = int(cap * 0.80)         # hard scoped-VMEM limit handed to Mosaic

    def _vmem_est(tile):
        m = D_out * tile
        est = D_in * tile * cin_p * 2 * 2            # x block, bf16, 2 buffers
        est += m * cout_tile * out_bytes * 2         # output block, 2 buffers
        est += w_bytes * w_buf                       # weights (1 or 2 buffers)
        est += m * cin_p * 2 + m * cout_tile * 4     # matmul LHS view + f32 acc
        if grouped:
            est += m * cout_tile * (2 + 4)           # bf16 mid + pointwise f32 acc
        return est

    hw_tile = min(_HW_TILE_TARGET, _round_up(HW, _ROW_QUANTUM))
    while hw_tile > _ROW_QUANTUM and _vmem_est(hw_tile) > budget:
        hw_tile = max(_ROW_QUANTUM, _round_up(hw_tile // 2, _ROW_QUANTUM))
    n_hw = -(-HW // hw_tile)
    hw_tile = _round_up(-(-HW // n_hw), _ROW_QUANTUM)   # minimize HW padding
    HWp = hw_tile * n_hw
    vmem_limit = int(min(max(int(_vmem_est(hw_tile) * 1.25), 32 << 20), limit_cap))

    # ---- Spatial/channel glue (cheap fused XLA pad/convert; no gather). ----
    x_p = jnp.pad(x_cl, ((0, 0), (pd, pd), (ph, ph), (pw, pw), (0, cin_p - Cin)))
    x_p = x_p[:, :, ::sh, ::sw, :][:, :, :H_out, :W_out, :]
    x_p = x_p.reshape(N, D_in, HW, cin_p).astype(jnp.bfloat16)
    x_p = jnp.pad(x_p, ((0, 0), (0, 0), (0, HWp - HW), (0, 0)))

    def _pad_lane(v):   # (Cout,) f32 -> (1, Cout_p) f32, zero padded
        return jnp.pad(v.astype(jnp.float32), (0, cout_p - Cout))[None, :]

    scale_k = _pad_lane(p["bn_scale"])
    shift_k = _pad_lane(p["bn_shift"])
    out_shape = jax.ShapeDtypeStruct((N, D_out, HWp, cout_p), out_dtype)

    if grouped:
        grid = (N, n_hw)
        dims = ("parallel", "parallel")
        # Densify the grouped weights into block-sparse per-tap (Cin, Cout)
        # matrices: the slot expansion happens on the MXU in-kernel (no HBM
        # gather, x is read once in natural layout).  MXU overspend is a few x
        # the pointwise conv and beats the extra HBM round trip it replaces.
        groups = p["groups"]
        cin_g = Cin // groups
        cout_g = Cout // groups
        in_ch = ((jnp.arange(Cout)[:, None] // cout_g) * cin_g
                 + jnp.arange(cin_g)[None, :])                      # (Cout, cin_g)
        onehot = jax.nn.one_hot(in_ch, Cin, dtype=jnp.float32)       # (Cout, S, Cin)
        w1d = jnp.einsum("osi,osk->kio", onehot, p["w1_pt"])         # (3, Cin, Cout)
        w1d = jnp.pad(w1d, ((0, 0), (0, cin_p - Cin), (0, cout_p - Cout)))
        w1d = w1d.astype(jnp.bfloat16)
        b1 = _pad_lane(p["b1"])
        w2 = jnp.pad(p["w2_pt"].T, ((0, cout_p - Cout), (0, cout_p - Cout)))
        w2 = w2.astype(jnp.bfloat16)

        kernel = functools.partial(_grouped_conv_kernel, sd=sd, final_relu=is_relu)
        in_specs = [
            pl.BlockSpec((1, D_in, hw_tile, cin_p), lambda n, h: (n, 0, h, 0)),
            _weight_spec((3, cin_p, cout_p), lambda n, h: (0, 0, 0), w_mode),
            _weight_spec((1, cout_p), lambda n, h: (0, 0), w_mode),
            _weight_spec((cout_p, cout_p), lambda n, h: (0, 0), w_mode),
            _weight_spec((1, cout_p), lambda n, h: (0, 0), w_mode),
            _weight_spec((1, cout_p), lambda n, h: (0, 0), w_mode),
        ]
        out_spec = pl.BlockSpec((1, D_out, hw_tile, cout_p),
                                lambda n, h: (n, 0, h, 0))
        args = (x_p, w1d, b1, w2, scale_k, shift_k)
    else:
        grid = (N, n_hw, n_cout)
        dims = ("parallel", "parallel", "parallel")
        w1 = jnp.transpose(p["w1_pt"], (2, 1, 0))                    # (3, Cin, Cout)
        w1 = jnp.pad(w1, ((0, 0), (0, cin_p - Cin), (0, cout_p - Cout)))
        w1 = w1.astype(jnp.bfloat16)

        kernel = functools.partial(_dense_conv_kernel, sd=sd, final_relu=is_relu)
        in_specs = [
            pl.BlockSpec((1, D_in, hw_tile, cin_p), lambda n, h, c: (n, 0, h, 0)),
            _weight_spec((3, cin_p, cout_tile), lambda n, h, c: (0, 0, c), w_mode),
            _weight_spec((1, cout_tile), lambda n, h, c: (0, c), w_mode),
            _weight_spec((1, cout_tile), lambda n, h, c: (0, c), w_mode),
        ]
        out_spec = pl.BlockSpec((1, D_out, hw_tile, cout_tile),
                                lambda n, h, c: (n, 0, h, c))
        args = (x_p, w1, scale_k, shift_k)

    out = pl.pallas_call(
        kernel,
        out_shape=out_shape,
        grid_spec=pltpu.PrefetchScalarGridSpec(
            num_scalar_prefetch=0, grid=grid,
            in_specs=in_specs, out_specs=out_spec),
        compiler_params=pltpu.CompilerParams(
            dimension_semantics=dims, vmem_limit_bytes=vmem_limit),
    )(*args)

    out = out[:, :, :HW, :Cout].reshape(N, D_out, H_out, W_out, Cout)
    return out


def conv3x1x1_forward(x, p, *, stride=(1, 1, 1), padding=(1, 0, 0),
                      is_relu=True, out_dtype=jnp.bfloat16):
    """PyTorch NCDHW boundary shim around the channels-last core."""
    x_cl = jnp.transpose(x, (0, 2, 3, 4, 1))
    y_cl = conv3x1x1_forward_channels_last(x_cl, p, stride=stride,
                                           padding=padding, is_relu=is_relu,
                                           out_dtype=out_dtype)
    return jnp.transpose(y_cl, (0, 4, 1, 2, 3))


# ---------------------------------------------------------------------------
# Pure-JAX reference (f32, lax.conv) with identical semantics
# ---------------------------------------------------------------------------
def _ref_forward(x, p, *, stride, padding, is_relu):
    pads = [(padding[0], padding[0]), (padding[1], padding[1]),
            (padding[2], padding[2])]
    w1 = p["w1_pt"][:, :, :, None, None]                    # (Cout, Cin/g, 3, 1, 1)
    y = lax.conv_general_dilated(
        x, w1, window_strides=stride, padding=pads,
        dimension_numbers=("NCDHW", "OIDHW", "NCDHW"),
        feature_group_count=p["groups"])
    if p["grouped"]:
        y = y + p["b1"][None, :, None, None, None]
        y = jnp.maximum(y, 0.0)
        w2 = p["w2_pt"][:, :, None, None, None]
        y = lax.conv_general_dilated(
            y, w2, window_strides=(1, 1, 1), padding=[(0, 0)] * 3,
            dimension_numbers=("NCDHW", "OIDHW", "NCDHW"))
    y = (y * p["bn_scale"][None, :, None, None, None]
         + p["bn_shift"][None, :, None, None, None])
    if is_relu:
        y = jnp.maximum(y, 0.0)
    return y


if __name__ == "__main__":
    key = jax.random.PRNGKey(0)
    stride, padding = (1, 1, 1), (1, 0, 0)      # as used by every BottleNeck
    N, D, H, W = 2, 6, 5, 5
    # (Cin, Cout, is_group_conv, is_relu):
    #   grouped Cout>Cin, grouped Cin>Cout, plain dense.
    configs = [(4, 8, True, False), (8, 4, True, True), (4, 8, False, False)]
    for i, (cin, cout, is_group, is_relu) in enumerate(configs):
        kx, kp = jax.random.split(jax.random.fold_in(key, i))
        x = jax.random.normal(kx, (N, cin, D, H, W), jnp.float32)
        params = init_params(kp, cin, cout, is_group)
        out = conv3x1x1_forward(x, params, stride=stride, padding=padding,
                                is_relu=is_relu)
        out = jax.block_until_ready(out)
        ref = _ref_forward(x, params, stride=stride, padding=padding,
                           is_relu=is_relu)
        assert out.shape == ref.shape == (N, cout, D, H, W), (out.shape, ref.shape)
        err = float(jnp.max(jnp.abs(out.astype(jnp.float32) - ref)))
        assert err < 5e-2, f"max abs error {err} (bf16 matmul operands + bf16 output)"
    print("KERNEL_OK")
</pallas_src>

<mosaic_0001>
module attributes {stable_mosaic.version = 11 : i64} {
  func.func @k(%arg0: i32, %arg1: memref<8x128xf32, #tpu.memory_space<vmem>>, %arg2: memref<8x128xf32, #tpu.memory_space<vmem>>, %arg3: memref<8x128xf32, #tpu.memory_space<vmem>>) attributes {dimension_semantics = [#tpu.dimension_semantics<arbitrary>], iteration_bounds = array<i64: 2>, scalar_prefetch = 0 : i64, scratch_operands = 0 : i64, tpu.core_type = #tpu.core_type<tc>, window_params = [{transform_indices = @transform_0, window_bounds = array<i64: 8, 128>}, {pipeline_mode = #tpu.pipeline_mode<synchronous>, transform_indices = @transform_1, window_bounds = array<i64: 8, 128>}, {transform_indices = @transform_2, window_bounds = array<i64: 8, 128>}]} {
    %c0 = arith.constant 0 : index
    %c0_0 = arith.constant 0 : index
    %0 = vector.load %arg1[%c0, %c0_0] : memref<8x128xf32, #tpu.memory_space<vmem>>, vector<8x128xf32>
    %c0_1 = arith.constant 0 : index
    %c0_2 = arith.constant 0 : index
    %1 = vector.load %arg2[%c0_1, %c0_2] : memref<8x128xf32, #tpu.memory_space<vmem>>, vector<8x128xf32>
    %2 = arith.addf %0, %1 : vector<8x128xf32>
    %c0_3 = arith.constant 0 : index
    %c0_4 = arith.constant 0 : index
    %3 = vector.load %arg3[%c0_3, %c0_4] : memref<8x128xf32, #tpu.memory_space<vmem>>, vector<8x128xf32>
    tpu.vector_store %arg3[%c0_3, %c0_4], %2 {strides = array<i32>} : memref<8x128xf32, #tpu.memory_space<vmem>>, vector<8x128xf32>,
    return
  }
  func.func @transform_0(%arg0: i32) -> (i32, i32) {
    %c0_i32 = arith.constant 0 : i32
    %c0_i32_0 = arith.constant 0 : i32
    return %arg0, %c0_i32 : i32, i32
  }
  func.func @transform_1(%arg0: i32) -> (i32, i32) {
    %c0_i32 = arith.constant 0 : i32
    %c0_i32_0 = arith.constant 0 : i32
    %c0_i32_1 = arith.constant 0 : i32
    return %c0_i32, %c0_i32_0 : i32, i32
  }
  func.func @transform_2(%arg0: i32) -> (i32, i32) {
    %c0_i32 = arith.constant 0 : i32
    %c0_i32_0 = arith.constant 0 : i32
    return %arg0, %c0_i32 : i32, i32
  }
}

module attributes {stable_mosaic.version = 11 : i64} {
  func.func @_grouped_conv_kernel(%arg0: i32, %arg1: i32, %arg2: memref<1x8x32x128xbf16, #tpu.memory_space<vmem>>, %arg3: memref<3x128x128xbf16, #tpu.memory_space<vmem>>, %arg4: memref<1x128xf32, #tpu.memory_space<vmem>>, %arg5: memref<128x128xbf16, #tpu.memory_space<vmem>>, %arg6: memref<1x128xf32, #tpu.memory_space<vmem>>, %arg7: memref<1x128xf32, #tpu.memory_space<vmem>>, %arg8: memref<1x6x32x128xbf16, #tpu.memory_space<vmem>>) attributes {dimension_semantics = [#tpu.dimension_semantics<parallel>, #tpu.dimension_semantics<parallel>], iteration_bounds = array<i64: 2, 1>, scalar_prefetch = 0 : i64, scratch_operands = 0 : i64, tpu.core_type = #tpu.core_type<tc>, window_params = [{transform_indices = @transform_0, window_bounds = array<i64: 1, 8, 32, 128>}, {pipeline_mode = #tpu.pipeline_mode<synchronous>, transform_indices = @transform_1, window_bounds = array<i64: 3, 128, 128>}, {pipeline_mode = #tpu.pipeline_mode<synchronous>, transform_indices = @transform_2, window_bounds = array<i64: 1, 128>}, {pipeline_mode = #tpu.pipeline_mode<synchronous>, transform_indices = @transform_3, window_bounds = array<i64: 128, 128>}, {pipeline_mode = #tpu.pipeline_mode<synchronous>, transform_indices = @transform_4, window_bounds = array<i64: 1, 128>}, {pipeline_mode = #tpu.pipeline_mode<synchronous>, transform_indices = @transform_5, window_bounds = array<i64: 1, 128>}, {transform_indices = @transform_6, window_bounds = array<i64: 1, 6, 32, 128>}]} {
    %c0 = arith.constant 0 : index
    %c0_0 = arith.constant 0 : index
    %c0_1 = arith.constant 0 : index
    %c0_2 = arith.constant 0 : index
    %0 = vector.load %arg2[%c0, %c0_0, %c0_1, %c0_2] : memref<1x8x32x128xbf16, #tpu.memory_space<vmem>>, vector<1x6x32x128xbf16>
    %1 = vector.shape_cast %0 : vector<1x6x32x128xbf16> to vector<6x32x128xbf16>
    %2 = vector.shape_cast %1 : vector<6x32x128xbf16> to vector<192x128xbf16>
    %c0_3 = arith.constant 0 : index
    %c0_4 = arith.constant 0 : index
    %c0_5 = arith.constant 0 : index
    %3 = vector.load %arg3[%c0_3, %c0_4, %c0_5] : memref<3x128x128xbf16, #tpu.memory_space<vmem>>, vector<1x128x128xbf16>
    %4 = vector.shape_cast %3 : vector<1x128x128xbf16> to vector<128x128xbf16>
    %cst = arith.constant dense<0.000000e+00> : vector<192x128xf32>
    %5 = tpu.matmul %2, %4, %cst {dimension_numbers = #tpu.dot_dimension_numbers<[1], [0], [0], [1], [0, 0, 1, 1], [], []>} : vector<192x128xbf16>, vector<128x128xbf16>, vector<192x128xf32> -> vector<192x128xf32>
    %c0_6 = arith.constant 0 : index
    %c1 = arith.constant 1 : index
    %c0_7 = arith.constant 0 : index
    %c0_8 = arith.constant 0 : index
    %6 = vector.load %arg2[%c0_6, %c1, %c0_7, %c0_8] : memref<1x8x32x128xbf16, #tpu.memory_space<vmem>>, vector<1x6x32x128xbf16>
    %7 = vector.shape_cast %6 : vector<1x6x32x128xbf16> to vector<6x32x128xbf16>
    %8 = vector.shape_cast %7 : vector<6x32x128xbf16> to vector<192x128xbf16>
    %c1_9 = arith.constant 1 : index
    %c0_10 = arith.constant 0 : index
    %c0_11 = arith.constant 0 : index
    %9 = vector.load %arg3[%c1_9, %c0_10, %c0_11] : memref<3x128x128xbf16, #tpu.memory_space<vmem>>, vector<1x128x128xbf16>
    %10 = vector.shape_cast %9 : vector<1x128x128xbf16> to vector<128x128xbf16>
    %cst_12 = arith.constant dense<0.000000e+00> : vector<192x128xf32>
    %11 = tpu.matmul %8, %10, %cst_12 {dimension_numbers = #tpu.dot_dimension_numbers<[1], [0], [0], [1], [0, 0, 1, 1], [], []>} : vector<192x128xbf16>, vector<128x128xbf16>, vector<192x128xf32> -> vector<192x128xf32>
    %12 = arith.addf %5, %11 : vector<192x128xf32>
    %c0_13 = arith.constant 0 : index
    %c2 = arith.constant 2 : index
    %c0_14 = arith.constant 0 : index
    %c0_15 = arith.constant 0 : index
    %13 = vector.load %arg2[%c0_13, %c2, %c0_14, %c0_15] : memref<1x8x32x128xbf16, #tpu.memory_space<vmem>>, vector<1x6x32x128xbf16>
    %14 = vector.shape_cast %13 : vector<1x6x32x128xbf16> to vector<6x32x128xbf16>
    %15 = vector.shape_cast %14 : vector<6x32x128xbf16> to vector<192x128xbf16>
    %c2_16 = arith.constant 2 : index
    %c0_17 = arith.constant 0 : index
    %c0_18 = arith.constant 0 : index
    %16 = vector.load %arg3[%c2_16, %c0_17, %c0_18] : memref<3x128x128xbf16, #tpu.memory_space<vmem>>, vector<1x128x128xbf16>
    %17 = vector.shape_cast %16 : vector<1x128x128xbf16> to vector<128x128xbf16>
    %cst_19 = arith.constant dense<0.000000e+00> : vector<192x128xf32>
    %18 = tpu.matmul %15, %17, %cst_19 {dimension_numbers = #tpu.dot_dimension_numbers<[1], [0], [0], [1], [0, 0, 1, 1], [], []>} : vector<192x128xbf16>, vector<128x128xbf16>, vector<192x128xf32> -> vector<192x128xf32>
    %19 = arith.addf %12, %18 : vector<192x128xf32>
    %c0_20 = arith.constant 0 : index
    %c0_21 = arith.constant 0 : index
    %20 = vector.load %arg4[%c0_20, %c0_21] : memref<1x128xf32, #tpu.memory_space<vmem>>, vector<1x128xf32>
    %21 = vector.shape_cast %20 : vector<1x128xf32> to vector<128xf32>
    %22 = vector.shape_cast %21 : vector<128xf32> to vector<1x128xf32>
    %23 = vector.broadcast %22 : vector<1x128xf32> to vector<192x128xf32>
    %24 = arith.addf %19, %23 : vector<192x128xf32>
    %cst_22 = arith.constant 0.000000e+00 : f32
    %25 = vector.broadcast %cst_22 : f32 to vector<192x128xf32>
    %26 = arith.maximumf %24, %25 : vector<192x128xf32>
    %27 = arith.truncf %26 : vector<192x128xf32> to vector<192x128xbf16>
    %c0_23 = arith.constant 0 : index
    %c0_24 = arith.constant 0 : index
    %28 = vector.load %arg5[%c0_23, %c0_24] : memref<128x128xbf16, #tpu.memory_space<vmem>>, vector<128x128xbf16>
    %cst_25 = arith.constant dense<0.000000e+00> : vector<192x128xf32>
    %29 = tpu.matmul %27, %28, %cst_25 {dimension_numbers = #tpu.dot_dimension_numbers<[1], [0], [0], [1], [0, 0, 1, 1], [], []>} : vector<192x128xbf16>, vector<128x128xbf16>, vector<192x128xf32> -> vector<192x128xf32>
    %c0_26 = arith.constant 0 : index
    %c0_27 = arith.constant 0 : index
    %30 = vector.load %arg6[%c0_26, %c0_27] : memref<1x128xf32, #tpu.memory_space<vmem>>, vector<1x128xf32>
    %31 = vector.shape_cast %30 : vector<1x128xf32> to vector<128xf32>
    %32 = vector.shape_cast %31 : vector<128xf32> to vector<1x128xf32>
    %33 = vector.broadcast %32 : vector<1x128xf32> to vector<192x128xf32>
    %34 = arith.mulf %29, %33 : vector<192x128xf32>
    %c0_28 = arith.constant 0 : index
    %c0_29 = arith.constant 0 : index
    %35 = vector.load %arg7[%c0_28, %c0_29] : memref<1x128xf32, #tpu.memory_space<vmem>>, vector<1x128xf32>
    %36 = vector.shape_cast %35 : vector<1x128xf32> to vector<128xf32>
    %37 = vector.shape_cast %36 : vector<128xf32> to vector<1x128xf32>
    %38 = vector.broadcast %37 : vector<1x128xf32> to vector<192x128xf32>
    %39 = arith.addf %34, %38 : vector<192x128xf32>
    %40 = vector.shape_cast %39 : vector<192x128xf32> to vector<6x32x128xf32>
    %41 = arith.truncf %40 : vector<6x32x128xf32> to vector<6x32x128xbf16>
    %c0_30 = arith.constant 0 : index
    %c0_31 = arith.constant 0 : index
    %c0_32 = arith.constant 0 : index
    %c0_33 = arith.constant 0 : index
    %42 = vector.load %arg8[%c0_30, %c0_31, %c0_32, %c0_33] : memref<1x6x32x128xbf16, #tpu.memory_space<vmem>>, vector<1x6x32x128xbf16>
    %43 = vector.shape_cast %42 : vector<1x6x32x128xbf16> to vector<6x32x128xbf16>
    %44 = vector.shape_cast %41 : vector<6x32x128xbf16> to vector<1x6x32x128xbf16>
    tpu.vector_store %arg8[%c0_30, %c0_31, %c0_32, %c0_33], %44 {strides = array<i32>} : memref<1x6x32x128xbf16, #tpu.memory_space<vmem>>, vector<1x6x32x128xbf16>,
    return
  }
  func.func @transform_0(%arg0: i32, %arg1: i32) -> (i32, i32, i32, i32) {
    %c0_i32 = arith.constant 0 : i32
    %c0_i32_0 = arith.constant 0 : i32
    %c0_i32_1 = arith.constant 0 : i32
    return %arg0, %c0_i32, %arg1, %c0_i32_0 : i32, i32, i32, i32
  }
  func.func @transform_1(%arg0: i32, %arg1: i32) -> (i32, i32, i32) {
    %c0_i32 = arith.constant 0 : i32
    %c0_i32_0 = arith.constant 0 : i32
    %c0_i32_1 = arith.constant 0 : i32
    %c0_i32_2 = arith.constant 0 : i32
    return %c0_i32, %c0_i32_0, %c0_i32_1 : i32, i32, i32
  }
  func.func @transform_2(%arg0: i32, %arg1: i32) -> (i32, i32) {
    %c0_i32 = arith.constant 0 : i32
    %c0_i32_0 = arith.constant 0 : i32
    %c0_i32_1 = arith.constant 0 : i32
    return %c0_i32, %c0_i32_0 : i32, i32
  }
  func.func @transform_3(%arg0: i32, %arg1: i32) -> (i32, i32) {
    %c0_i32 = arith.constant 0 : i32
    %c0_i32_0 = arith.constant 0 : i32
    %c0_i32_1 = arith.constant 0 : i32
    return %c0_i32, %c0_i32_0 : i32, i32
  }
  func.func @transform_4(%arg0: i32, %arg1: i32) -> (i32, i32) {
    %c0_i32 = arith.constant 0 : i32
    %c0_i32_0 = arith.constant 0 : i32
    %c0_i32_1 = arith.constant 0 : i32
    return %c0_i32, %c0_i32_0 : i32, i32
  }
  func.func @transform_5(%arg0: i32, %arg1: i32) -> (i32, i32) {
    %c0_i32 = arith.constant 0 : i32
    %c0_i32_0 = arith.constant 0 : i32
    %c0_i32_1 = arith.constant 0 : i32
    return %c0_i32, %c0_i32_0 : i32, i32
  }
  func.func @transform_6(%arg0: i32, %arg1: i32) -> (i32, i32, i32, i32) {
    %c0_i32 = arith.constant 0 : i32
    %c0_i32_0 = arith.constant 0 : i32
    %c0_i32_1 = arith.constant 0 : i32
    return %arg0, %c0_i32, %arg1, %c0_i32_0 : i32, i32, i32, i32
  }
}

</mosaic_0001>

<llo_original>
// kernel: tpu_custom_call.1
$region0: #{tpu_custom_call.1}
  #allocation0 [shape = 'u32[]', space=smem, size = 0x4, offset = 0x4, fixed_abs, tag = 'smem constant byte address 0x4 - core index']
  #allocation1 [shape = 'u32[144,128]{1,0:T(1,128)}', space=vmem, size = 0x12000, scoped, tag = 'internal scratch']
  %s0 = inlined_call_operand.hbm [shape: f32[16,128], index: 0, kind: input, shape index: {}]
  %s1 = inlined_call_operand.hbm [shape: f32[8,128], index: 1, kind: input, shape index: {}]
  %s2 = inlined_call_operand.hbm [shape: f32[16,128], index: 2, kind: output, shape index: {}]
  %s3 = sld [smem:[#allocation0]]
  $region49: #{tpu_custom_call.1} parent=0
    _
  %s5 = ssub.s32 1, %s3
  %s6 = scalar_select 0, %s5, %s3
  $region1: #{tpu_custom_call.1} parent=0
    #allocation2 [shape = 'u8[8192]{0}', space=vmem, size = 0x2000, scoped, tag = 'input window, operand 0']
    #allocation3 [shape = 's32[2]{0}', space=sflag, size = 0x8, scoped, tag = 'scoped memory for tpu_custom_call.1']
    #allocation4 [shape = 's32[2]{0}', space=sflag, size = 0x8, scoped, tag = 'scoped memory for tpu_custom_call.1']
    #allocation5 [shape = 'u8[4096]{0}', space=vmem, size = 0x1000, scoped, tag = 'input window, operand 1, single buffered']
    #allocation6 [shape = 's32[1]{0}', space=sflag, size = 0x4, scoped, tag = 'scoped memory for tpu_custom_call.1']
    #allocation7 [shape = 'u8[8192]{0}', space=vmem, size = 0x2000, scoped, tag = 'output window, operand 0']
    %7 = vsyncpa [#allocation3], 0
    %s8 = scalar_lea.sflag [#allocation3], 1
    %9 = vsyncpa %s8, 0
    %10 = vsyncpa [#allocation6], 0
    %11 = vsyncpa [#allocation4], 0
    %s12 = scalar_lea.sflag [#allocation4], 1
    %13 = vsyncpa %s12, 0
    loop: start=0, step=1, limit=4
    $region2: #{tpu_custom_call.1} parent=1 // loop_pre_header
      _
    $region3: #{tpu_custom_call.1} parent=1 // loop_header
      %s15 = sphi 0, %s19
      %p16 = scmp.ge.s32.totalorder %s15, 4
      %s25 = sphi 0, %s27
      %s28 = sphi 0, %s25
      %s29 = sphi 0, %s28
      %s45 = sphi 0, %s29
      %s49 = sphi 0, %s49
      %s51 = sphi 0, %s49
      %s52 = sphi 0, %s51
      %s66 = sphi 0, %s52
      %s72 = sphi 0, %s74
      %s75 = sphi 0, %s72
      %s76 = sphi 0, %s75
      %s92 = sphi 0, %s76
    $region4: #{tpu_custom_call.1} parent=1 // loop_header_branch
      %18 = sbr.rel (%p16) target = $region8
    $region5: #{tpu_custom_call.1} parent=1 // loop_body
      %s20 = ssub.s32 %s15, 1
      %s21 = ssub.s32 %s15, 2
      %s22 = sadd.s32 %s15, 1
      %s23 = ssub.s32 %s15, %s22
      %p24 = scmp.eq.s32.totalorder %s23, 0
      %s26 = sadd.s32 %s25, 1
      %s27 = scalar_select %p24, %s25, %s26
      %p30 = pneg %p24
      %p31 = scmp.eq.s32.totalorder %s15, 1
      %p32 = por %p30, %p31
      %p33 = scmp.ne.s32.totalorder %s25, %s28
      %p34 = scmp.eq.s32.totalorder %s15, 0
      %p35 = por %p33, %p34
      %p36 = scmp.ne.s32.totalorder %s25, %s28
      %p37 = scmp.eq.s32.totalorder %s20, 1
      %p38 = por %p36, %p37
      %p39 = scmp.ne.s32.totalorder %s28, %s29
      %p40 = scmp.eq.s32.totalorder %s20, 0
      %p41 = por %p39, %p40
      %p42 = scmp.ne.s32.totalorder %s28, %s29
      %p43 = scmp.eq.s32.totalorder %s21, 1
      %p44 = por %p42, %p43
      %p46 = scmp.ne.s32.totalorder %s29, %s45
      %p47 = scmp.eq.s32.totalorder %s21, 0
      %p48 = por %p46, %p47
      %s50 = sadd.s32 %s49, 1
      %p53 = scmp.eq.s32.totalorder %s15, 1
      %p54 = scmp.ne.s32.totalorder %s49, %s51
      %p55 = scmp.eq.s32.totalorder %s15, 0
      %p56 = por %p54, %p55
      %p57 = scmp.ne.s32.totalorder %s49, %s51
      %p58 = scmp.eq.s32.totalorder %s20, 1
      %p59 = por %p57, %p58
      %p60 = scmp.ne.s32.totalorder %s51, %s52
      %p61 = scmp.eq.s32.totalorder %s20, 0
      %p62 = por %p60, %p61
      %p63 = scmp.ne.s32.totalorder %s51, %s52
      %p64 = scmp.eq.s32.totalorder %s21, 1
      %p65 = por %p63, %p64
      %p67 = scmp.ne.s32.totalorder %s52, %s66
      %p68 = scmp.eq.s32.totalorder %s21, 0
      %p69 = por %p67, %p68
      %s70 = ssub.s32 %s15, %s22
      %p71 = scmp.eq.s32.totalorder %s70, 0
      %s73 = sadd.s32 %s72, 1
      %s74 = scalar_select %p71, %s72, %s73
      %p77 = pneg %p71
      %p78 = scmp.eq.s32.totalorder %s15, 1
      %p79 = por %p77, %p78
      %p80 = scmp.ne.s32.totalorder %s72, %s75
      %p81 = scmp.eq.s32.totalorder %s15, 0
      %p82 = por %p80, %p81
      %p83 = scmp.ne.s32.totalorder %s72, %s75
      %p84 = scmp.eq.s32.totalorder %s20, 1
      %p85 = por %p83, %p84
      %p86 = scmp.ne.s32.totalorder %s75, %s76
      %p87 = scmp.eq.s32.totalorder %s20, 0
      %p88 = por %p86, %p87
      %p89 = scmp.ne.s32.totalorder %s75, %s76
      %p90 = scmp.eq.s32.totalorder %s21, 1
      %p91 = por %p89, %p90
      %p93 = scmp.ne.s32.totalorder %s76, %s92
      %p94 = scmp.eq.s32.totalorder %s21, 0
      %p95 = por %p93, %p94
      %p96 = scmp.le.s32.totalorder 1, %s15
      %p97 = scmp.lt.s32.totalorder %s15, 3
      %p98 = pnand %p96, %p97
      %p99 = pneg %p98
      // Predicated region
      $region9: #{tpu_custom_call.1} parent=5 // pred_check
        _
      $region10: #{tpu_custom_call.1} parent=5 // pred_check_branch
        %101 = sbr.rel (%p98) target = $region12
      $region11: #{tpu_custom_call.1} parent=5 // pred_region
        %s102 = ssub.s32 %s15, 1
        // Predicated region
        $region13: #{tpu_custom_call.1} parent=11 // pred_check
          %p103 = pneg %p62
        $region14: #{tpu_custom_call.1} parent=11 // pred_check_branch
          %105 = sbr.rel (%p103) target = $region16
        $region15: #{tpu_custom_call.1} parent=11 // pred_region
          %s107 = ssub.s32 128, 128
          %108 = vsyncadd [#allocation6], %s107
          %s110 = sshll.u32 [#allocation5], 4
          %s111 = int_to_ptr.vmem [resolvable:$true] %s110
          %113 = dma.hbm_to_vmem [thread:$0]  %s1, 128, %s111, [#allocation6]
        $region16: #{tpu_custom_call.1} parent=11 // pred_fallthru
          _
      $region12: #{tpu_custom_call.1} parent=5 // pred_fallthru
        _
      %p114 = scmp.lt.s32.totalorder %s15, 2
      // Predicated region
      $region17: #{tpu_custom_call.1} parent=5 // pred_check
        %p115 = pneg %p114
      $region18: #{tpu_custom_call.1} parent=5 // pred_check_branch
        %117 = sbr.rel (%p115) target = $region20
      $region19: #{tpu_custom_call.1} parent=5 // pred_region
        // Predicated region
        $region21: #{tpu_custom_call.1} parent=19 // pred_check
          %p118 = pneg %p35
        $region22: #{tpu_custom_call.1} parent=19 // pred_check_branch
          %120 = sbr.rel (%p118) target = $region24
        $region23: #{tpu_custom_call.1} parent=19 // pred_region
          %s121 = sand.u32 %s25, 1
          %s122 = scalar_lea.sflag [#allocation3], %s121
          %s123 = sand.u32 %s25, 1
          %s124 = smul.addr %s123, 8
          %s125 = scalar_lea.vmem [#allocation2], %s124
          %s127 = ssub.s32 128, 128
          %128 = vsyncadd %s122, %s127
          %s129 = smul.addr %s15, 128
          %s130 = scalar_lea.hbm %s0, %s129
          %s132 = sshll.u32 %s125, 4
          %s133 = int_to_ptr.vmem [resolvable:$true] %s132
          %135 = dma.hbm_to_vmem [thread:$0]  %s130, 128, %s133, %s122
        $region24: #{tpu_custom_call.1} parent=19 // pred_fallthru
          _
      $region20: #{tpu_custom_call.1} parent=5 // pred_fallthru
        _
      %p136 = scmp.le.s32.totalorder 1, %s15
      %p137 = scmp.lt.s32.totalorder %s15, 3
      %p138 = pnand %p136, %p137
      %p139 = pneg %p138
      // Predicated region
      $region25: #{tpu_custom_call.1} parent=5 // pred_check
        _
      $region26: #{tpu_custom_call.1} parent=5 // pred_check_branch
        %141 = sbr.rel (%p138) target = $region28
      $region27: #{tpu_custom_call.1} parent=5 // pred_region
        %s142 = ssub.s32 %s15, 1
        %s143 = sand.u32 %s28, 1
        %s144 = scalar_lea.sflag [#allocation3], %s143
        %s145 = sand.u32 %s28, 1
        %s146 = smul.addr %s145, 8
        %s147 = scalar_lea.vmem [#allocation2], %s146
        // Predicated region
        $region29: #{tpu_custom_call.1} parent=27 // pred_check
          %p148 = pneg %p41
        $region30: #{tpu_custom_call.1} parent=27 // pred_check_branch
          %150 = sbr.rel (%p148) target = $region32
        $region31: #{tpu_custom_call.1} parent=27 // pred_region
          %151 = dma.done %s144, 128
        $region32: #{tpu_custom_call.1} parent=27 // pred_fallthru
          _
        // Predicated region
        $region33: #{tpu_custom_call.1} parent=27 // pred_check
          %p152 = pneg %p62
        $region34: #{tpu_custom_call.1} parent=27 // pred_check_branch
          %154 = sbr.rel (%p152) target = $region36
        $region35: #{tpu_custom_call.1} parent=27 // pred_region
          %155 = dma.done [#allocation6], 128
        $region36: #{tpu_custom_call.1} parent=27 // pred_fallthru
          _
        %s156 = sand.u32 %s28, 1
        %s157 = scalar_lea.sflag [#allocation3], %s156
        %s158 = sand.u32 %s28, 1
        %s159 = smul.addr %s158, 8
        %s160 = scalar_lea.vmem [#allocation2], %s159
        %p161 = pneg %p41
        %p162 = pneg %p38
        %p163 = pneg %p62
        %p164 = pneg %p59
        %p165 = pneg %p88
        %p166 = pneg %p85
        %s167 = sand.u32 %s75, 1
        %s168 = scalar_lea.sflag [#allocation4], %s167
        %s169 = sand.u32 %s75, 1
        %s170 = smul.addr %s169, 8
        %s171 = scalar_lea.vmem [#allocation7], %s170
        %v172 = vld [vmem:[%s147] sm:$0xff]
        %v173 = vld [vmem:[#allocation5] sm:$0xff]
        %v174 = vadd.f32 %v172, %v173
        %175 = vst [vmem:[%s171] sm:$0xff] %v174
        %s176 = sand.u32 %s75, 1
        %s177 = scalar_lea.sflag [#allocation4], %s176
        %s178 = sand.u32 %s75, 1
        %s179 = smul.addr %s178, 8
        %s180 = scalar_lea.vmem [#allocation7], %s179
        // Predicated region
        $region37: #{tpu_custom_call.1} parent=27 // pred_check
          %p181 = pneg %p85
        $region38: #{tpu_custom_call.1} parent=27 // pred_check_branch
          %183 = sbr.rel (%p181) target = $region40
        $region39: #{tpu_custom_call.1} parent=27 // pred_region
          %s185 = ssub.s32 128, 128
          %186 = vsyncadd %s177, %s185
          %s187 = smul.addr %s20, 128
          %s188 = scalar_lea.hbm %s2, %s187
          %s190 = sshll.u32 %s180, 4
          %s191 = int_to_ptr.vmem [resolvable:$true] %s190
          %193 = dma.vmem_to_hbm [thread:$0]  %s191, 128, %s188, %s177
        $region40: #{tpu_custom_call.1} parent=27 // pred_fallthru
          _
      $region28: #{tpu_custom_call.1} parent=5 // pred_fallthru
        _
      %p194 = scmp.le.s32.totalorder 2, %s15
      // Predicated region
      $region41: #{tpu_custom_call.1} parent=5 // pred_check
        %p195 = pneg %p194
      $region42: #{tpu_custom_call.1} parent=5 // pred_check_branch
        %197 = sbr.rel (%p195) target = $region44
      $region43: #{tpu_custom_call.1} parent=5 // pred_region
        %s198 = ssub.s32 %s15, 2
        // Predicated region
        $region45: #{tpu_custom_call.1} parent=43 // pred_check
          %p199 = pneg %p91
        $region46: #{tpu_custom_call.1} parent=43 // pred_check_branch
          %201 = sbr.rel (%p199) target = $region48
        $region47: #{tpu_custom_call.1} parent=43 // pred_region
          %s202 = sand.u32 %s76, 1
          %s203 = scalar_lea.sflag [#allocation4], %s202
          %s204 = sand.u32 %s76, 1
          %s205 = smul.addr %s204, 8
          %s206 = scalar_lea.vmem [#allocation7], %s205
          %207 = dma.done %s203, 128
        $region48: #{tpu_custom_call.1} parent=43 // pred_fallthru
          _
      $region44: #{tpu_custom_call.1} parent=5 // pred_fallthru
        _
    $region6: #{tpu_custom_call.1} parent=1 // loop_footer
      %s19 = sadd.s32 1, %s15
    $region7: #{tpu_custom_call.1} parent=1 // loop_footer_branch
      %14 = sbr.rel target = $region3
    $region8: #{tpu_custom_call.1} parent=1 // loop_exit
      _
    %208 = vsyncpa [#allocation3], 1
    %s209 = scalar_lea.sflag [#allocation3], 1
    %210 = vsyncpa %s209, 1
    %211 = vsyncpa [#allocation6], 1
    %212 = vsyncpa [#allocation4], 1
    %s213 = scalar_lea.sflag [#allocation4], 1
    %214 = vsyncpa %s213, 1

// kernel: tpu_custom_call.1
$region0: #{tpu_custom_call.1}
  #allocation0 [shape = 'u32[]', space=smem, size = 0x4, offset = 0x4, fixed_abs, tag = 'smem constant byte address 0x4 - core index']
  #allocation1 [shape = 'u32[144,128]{1,0:T(1,128)}', space=vmem, size = 0x12000, scoped, tag = 'internal scratch']
  %s0 = inlined_call_operand.hbm [shape: bf16[2,8,32,128], index: 0, kind: input, shape index: {}]
  %s1 = inlined_call_operand.hbm [shape: bf16[3,128,128], index: 1, kind: input, shape index: {}]
  %s2 = inlined_call_operand.vmem [shape: f32[1,128], index: 2, kind: input, shape index: {}]
  %s3 = inlined_call_operand.hbm [shape: bf16[128,128], index: 3, kind: input, shape index: {}]
  %s4 = inlined_call_operand.vmem [shape: f32[1,128], index: 4, kind: input, shape index: {}]
  %s5 = inlined_call_operand.vmem [shape: f32[1,128], index: 5, kind: input, shape index: {}]
  %s6 = inlined_call_operand.hbm [shape: bf16[2,6,32,128], index: 6, kind: output, shape index: {}]
  %s7 = sld [smem:[#allocation0]]
  $region69: #{tpu_custom_call.1} parent=0
    _
  %s9 = ssub.s32 1, %s7
  %s10 = scalar_select 0, %s9, %s7
  $region1: #{tpu_custom_call.1} parent=0
    #allocation2 [shape = 'u8[131072]{0}', space=vmem, size = 0x20000, scoped, tag = 'input window, operand 0']
    #allocation3 [shape = 's32[2]{0}', space=sflag, size = 0x8, scoped, tag = 'scoped memory for tpu_custom_call.1']
    #allocation4 [shape = 's32[2]{0}', space=sflag, size = 0x8, scoped, tag = 'scoped memory for tpu_custom_call.1']
    #allocation5 [shape = 'u8[98304]{0}', space=vmem, size = 0x18000, scoped, tag = 'input window, operand 1, single buffered']
    #allocation6 [shape = 's32[1]{0}', space=sflag, size = 0x4, scoped, tag = 'scoped memory for tpu_custom_call.1']
    #allocation7 [shape = 'u8[32768]{0}', space=vmem, size = 0x8000, scoped, tag = 'input window, operand 3, single buffered']
    #allocation8 [shape = 'u8[98304]{0}', space=vmem, size = 0x18000, scoped, tag = 'output window, operand 0']
    %11 = vsyncpa [#allocation3], 0
    %s12 = scalar_lea.sflag [#allocation3], 1
    %13 = vsyncpa %s12, 0
    %14 = vsyncpa [#allocation6], 0
    %15 = vsyncpa [#allocation4], 0
    %s16 = scalar_lea.sflag [#allocation4], 1
    %17 = vsyncpa %s16, 0
    loop: start=0, step=1, limit=4
    $region2: #{tpu_custom_call.1} parent=1 // loop_pre_header
      _
    $region3: #{tpu_custom_call.1} parent=1 // loop_header
      %s19 = sphi 0, %s23
      %p20 = scmp.ge.s32.totalorder %s19, 4
      %s26 = sphi 0, %s38
      %s27 = sphi 0, %s34
      %s28 = sphi 0, %s26
      %s29 = sphi 0, %s27
      %s30 = sphi 0, %s28
      %s31 = sphi 0, %s29
      %s43 = sphi 0, %s45
      %s46 = sphi 0, %s43
      %s47 = sphi 0, %s46
      %s63 = sphi 0, %s47
      %s67 = sphi 0, %s67
      %s69 = sphi 0, %s67
      %s70 = sphi 0, %s69
      %s84 = sphi 0, %s70
      %s88 = sphi 0, %s88
      %s90 = sphi 0, %s88
      %s91 = sphi 0, %s90
      %s105 = sphi 0, %s91
      %s109 = sphi 0, %s109
      %s111 = sphi 0, %s109
      %s112 = sphi 0, %s111
      %s126 = sphi 0, %s112
      %s130 = sphi 0, %s130
      %s132 = sphi 0, %s130
      %s133 = sphi 0, %s132
      %s147 = sphi 0, %s133
      %s151 = sphi 0, %s151
      %s153 = sphi 0, %s151
      %s154 = sphi 0, %s153
      %s168 = sphi 0, %s154
      %s176 = sphi 0, %s178
      %s179 = sphi 0, %s176
      %s180 = sphi 0, %s179
      %s196 = sphi 0, %s180
    $region4: #{tpu_custom_call.1} parent=1 // loop_header_branch
      %22 = sbr.rel (%p20) target = $region8
    $region5: #{tpu_custom_call.1} parent=1 // loop_body
      %s24 = ssub.s32 %s19, 1
      %s25 = ssub.s32 %s19, 2
      %s32 = sadd.s32 1, %s27
      %p33 = scmp.ge.s32.totalorder %s32, 1
      %s34 = scalar_select %p33, 0, %s32
      %s35 = sadd.s32 1, %s26
      %s36 = scalar_select %p33, %s35, %s26
      %p37 = scmp.ge.s32.totalorder %s36, 2
      %s38 = scalar_select %p37, 0, %s36
      %s39 = ssub.s32 %s26, %s38
      %s40 = ssub.s32 %s27, %s34
      %s41 = sor.u32 %s39, %s40
      %p42 = scmp.eq.s32.totalorder %s41, 0
      %s44 = sadd.s32 %s43, 1
      %s45 = scalar_select %p42, %s43, %s44
      %p48 = pneg %p42
      %p49 = scmp.eq.s32.totalorder %s19, 1
      %p50 = por %p48, %p49
      %p51 = scmp.ne.s32.totalorder %s43, %s46
      %p52 = scmp.eq.s32.totalorder %s19, 0
      %p53 = por %p51, %p52
      %p54 = scmp.ne.s32.totalorder %s43, %s46
      %p55 = scmp.eq.s32.totalorder %s24, 1
      %p56 = por %p54, %p55
      %p57 = scmp.ne.s32.totalorder %s46, %s47
      %p58 = scmp.eq.s32.totalorder %s24, 0
      %p59 = por %p57, %p58
      %p60 = scmp.ne.s32.totalorder %s46, %s47
      %p61 = scmp.eq.s32.totalorder %s25, 1
      %p62 = por %p60, %p61
      %p64 = scmp.ne.s32.totalorder %s47, %s63
      %p65 = scmp.eq.s32.totalorder %s25, 0
      %p66 = por %p64, %p65
      %s68 = sadd.s32 %s67, 1
      %p71 = scmp.eq.s32.totalorder %s19, 1
      %p72 = scmp.ne.s32.totalorder %s67, %s69
      %p73 = scmp.eq.s32.totalorder %s19, 0
      %p74 = por %p72, %p73
      %p75 = scmp.ne.s32.totalorder %s67, %s69
      %p76 = scmp.eq.s32.totalorder %s24, 1
      %p77 = por %p75, %p76
      %p78 = scmp.ne.s32.totalorder %s69, %s70
      %p79 = scmp.eq.s32.totalorder %s24, 0
      %p80 = por %p78, %p79
      %p81 = scmp.ne.s32.totalorder %s69, %s70
      %p82 = scmp.eq.s32.totalorder %s25, 1
      %p83 = por %p81, %p82
      %p85 = scmp.ne.s32.totalorder %s70, %s84
      %p86 = scmp.eq.s32.totalorder %s25, 0
      %p87 = por %p85, %p86
      %s89 = sadd.s32 %s88, 1
      %p92 = scmp.eq.s32.totalorder %s19, 1
      %p93 = scmp.ne.s32.totalorder %s88, %s90
      %p94 = scmp.eq.s32.totalorder %s19, 0
      %p95 = por %p93, %p94
      %p96 = scmp.ne.s32.totalorder %s88, %s90
      %p97 = scmp.eq.s32.totalorder %s24, 1
      %p98 = por %p96, %p97
      %p99 = scmp.ne.s32.totalorder %s90, %s91
      %p100 = scmp.eq.s32.totalorder %s24, 0
      %p101 = por %p99, %p100
      %p102 = scmp.ne.s32.totalorder %s90, %s91
      %p103 = scmp.eq.s32.totalorder %s25, 1
      %p104 = por %p102, %p103
      %p106 = scmp.ne.s32.totalorder %s91, %s105
      %p107 = scmp.eq.s32.totalorder %s25, 0
      %p108 = por %p106, %p107
      %s110 = sadd.s32 %s109, 1
      %p113 = scmp.eq.s32.totalorder %s19, 1
      %p114 = scmp.ne.s32.totalorder %s109, %s111
      %p115 = scmp.eq.s32.totalorder %s19, 0
      %p116 = por %p114, %p115
      %p117 = scmp.ne.s32.totalorder %s109, %s111
      %p118 = scmp.eq.s32.totalorder %s24, 1
      %p119 = por %p117, %p118
      %p120 = scmp.ne.s32.totalorder %s111, %s112
      %p121 = scmp.eq.s32.totalorder %s24, 0
      %p122 = por %p120, %p121
      %p123 = scmp.ne.s32.totalorder %s111, %s112
      %p124 = scmp.eq.s32.totalorder %s25, 1
      %p125 = por %p123, %p124
      %p127 = scmp.ne.s32.totalorder %s112, %s126
      %p128 = scmp.eq.s32.totalorder %s25, 0
      %p129 = por %p127, %p128
      %s131 = sadd.s32 %s130, 1
      %p134 = scmp.eq.s32.totalorder %s19, 1
      %p135 = scmp.ne.s32.totalorder %s130, %s132
      %p136 = scmp.eq.s32.totalorder %s19, 0
      %p137 = por %p135, %p136
      %p138 = scmp.ne.s32.totalorder %s130, %s132
      %p139 = scmp.eq.s32.totalorder %s24, 1
      %p140 = por %p138, %p139
      %p141 = scmp.ne.s32.totalorder %s132, %s133
      %p142 = scmp.eq.s32.totalorder %s24, 0
      %p143 = por %p141, %p142
      %p144 = scmp.ne.s32.totalorder %s132, %s133
      %p145 = scmp.eq.s32.totalorder %s25, 1
      %p146 = por %p144, %p145
      %p148 = scmp.ne.s32.totalorder %s133, %s147
      %p149 = scmp.eq.s32.totalorder %s25, 0
      %p150 = por %p148, %p149
      %s152 = sadd.s32 %s151, 1
      %p155 = scmp.eq.s32.totalorder %s19, 1
      %p156 = scmp.ne.s32.totalorder %s151, %s153
      %p157 = scmp.eq.s32.totalorder %s19, 0
      %p158 = por %p156, %p157
      %p159 = scmp.ne.s32.totalorder %s151, %s153
      %p160 = scmp.eq.s32.totalorder %s24, 1
      %p161 = por %p159, %p160
      %p162 = scmp.ne.s32.totalorder %s153, %s154
      %p163 = scmp.eq.s32.totalorder %s24, 0
      %p164 = por %p162, %p163
      %p165 = scmp.ne.s32.totalorder %s153, %s154
      %p166 = scmp.eq.s32.totalorder %s25, 1
      %p167 = por %p165, %p166
      %p169 = scmp.ne.s32.totalorder %s154, %s168
      %p170 = scmp.eq.s32.totalorder %s25, 0
      %p171 = por %p169, %p170
      %s172 = ssub.s32 %s26, %s38
      %s173 = ssub.s32 %s27, %s34
      %s174 = sor.u32 %s172, %s173
      %p175 = scmp.eq.s32.totalorder %s174, 0
      %s177 = sadd.s32 %s176, 1
      %s178 = scalar_select %p175, %s176, %s177
      %p181 = pneg %p175
      %p182 = scmp.eq.s32.totalorder %s19, 1
      %p183 = por %p181, %p182
      %p184 = scmp.ne.s32.totalorder %s176, %s179
      %p185 = scmp.eq.s32.totalorder %s19, 0
      %p186 = por %p184, %p185
      %p187 = scmp.ne.s32.totalorder %s176, %s179
      %p188 = scmp.eq.s32.totalorder %s24, 1
      %p189 = por %p187, %p188
      %p190 = scmp.ne.s32.totalorder %s179, %s180
      %p191 = scmp.eq.s32.totalorder %s24, 0
      %p192 = por %p190, %p191
      %p193 = scmp.ne.s32.totalorder %s179, %s180
      %p194 = scmp.eq.s32.totalorder %s25, 1
      %p195 = por %p193, %p194
      %p197 = scmp.ne.s32.totalorder %s180, %s196
      %p198 = scmp.eq.s32.totalorder %s25, 0
      %p199 = por %p197, %p198
      %p200 = scmp.le.s32.totalorder 1, %s19
      %p201 = scmp.lt.s32.totalorder %s19, 3
      %p202 = pnand %p200, %p201
      %p203 = pneg %p202
      // Predicated region
      $region9: #{tpu_custom_call.1} parent=5 // pred_check
        _
      $region10: #{tpu_custom_call.1} parent=5 // pred_check_branch
        %205 = sbr.rel (%p202) target = $region12
      $region11: #{tpu_custom_call.1} parent=5 // pred_region
        %s206 = ssub.s32 %s19, 1
        // Predicated region
        $region13: #{tpu_custom_call.1} parent=11 // pred_check
          %p207 = pneg %p80
        $region14: #{tpu_custom_call.1} parent=11 // pred_check_branch
          %209 = sbr.rel (%p207) target = $region16
        $region15: #{tpu_custom_call.1} parent=11 // pred_region
          %s211 = ssub.s32 3072, 3072
          %212 = vsyncadd [#allocation6], %s211
          %s213 = sshll.u32 [#allocation5], 4
          %s214 = int_to_ptr.vmem [resolvable:$true] %s213
          %219 = dma.hbm_to_vmem [thread:$0]  %s1, 3072, %s214, [#allocation6], 64, 64, 4
        $region16: #{tpu_custom_call.1} parent=11 // pred_fallthru
          _
        // Predicated region
        $region17: #{tpu_custom_call.1} parent=11 // pred_check
          %p220 = pneg %p101
        $region18: #{tpu_custom_call.1} parent=11 // pred_check_branch
          %222 = sbr.rel (%p220) target = $region20
        $region19: #{tpu_custom_call.1} parent=11 // pred_region
          _
        $region20: #{tpu_custom_call.1} parent=11 // pred_fallthru
          _
        // Predicated region
        $region21: #{tpu_custom_call.1} parent=11 // pred_check
          %p223 = pneg %p122
        $region22: #{tpu_custom_call.1} parent=11 // pred_check_branch
          %225 = sbr.rel (%p223) target = $region24
        $region23: #{tpu_custom_call.1} parent=11 // pred_region
          %s227 = ssub.s32 1024, 1024
          %228 = vsyncadd [#allocation6], %s227
          %s229 = sshll.u32 [#allocation7], 4
          %s230 = int_to_ptr.vmem [resolvable:$true] %s229
          %235 = dma.hbm_to_vmem [thread:$0]  %s3, 1024, %s230, [#allocation6], 64, 64, 4
        $region24: #{tpu_custom_call.1} parent=11 // pred_fallthru
          _
        // Predicated region
        $region25: #{tpu_custom_call.1} parent=11 // pred_check
          %p236 = pneg %p143
        $region26: #{tpu_custom_call.1} parent=11 // pred_check_branch
          %238 = sbr.rel (%p236) target = $region28
        $region27: #{tpu_custom_call.1} parent=11 // pred_region
          _
        $region28: #{tpu_custom_call.1} parent=11 // pred_fallthru
          _
        // Predicated region
        $region29: #{tpu_custom_call.1} parent=11 // pred_check
          %p239 = pneg %p164
        $region30: #{tpu_custom_call.1} parent=11 // pred_check_branch
          %241 = sbr.rel (%p239) target = $region32
        $region31: #{tpu_custom_call.1} parent=11 // pred_region
          _
        $region32: #{tpu_custom_call.1} parent=11 // pred_fallthru
          _
      $region12: #{tpu_custom_call.1} parent=5 // pred_fallthru
        _
      %p242 = scmp.lt.s32.totalorder %s19, 2
      // Predicated region
      $region33: #{tpu_custom_call.1} parent=5 // pred_check
        %p243 = pneg %p242
      $region34: #{tpu_custom_call.1} parent=5 // pred_check_branch
        %245 = sbr.rel (%p243) target = $region36
      $region35: #{tpu_custom_call.1} parent=5 // pred_region
        // Predicated region
        $region37: #{tpu_custom_call.1} parent=35 // pred_check
          %p246 = pneg %p53
        $region38: #{tpu_custom_call.1} parent=35 // pred_check_branch
          %248 = sbr.rel (%p246) target = $region40
        $region39: #{tpu_custom_call.1} parent=35 // pred_region
          %s249 = sand.u32 %s43, 1
          %s250 = scalar_lea.sflag [#allocation3], %s249
          %s251 = sand.u32 %s43, 1
          %s252 = smul.addr %s251, 128
          %s253 = scalar_lea.vmem [#allocation2], %s252
          %s254 = smul.u32 4, %s27
          %s256 = ssub.s32 2048, 2048
          %257 = vsyncadd %s250, %s256
          %s258 = smul.addr %s26, 32
          %s259 = sadd.s32 %s254, %s258
          %s260 = smul.addr %s259, 64
          %s261 = scalar_lea.hbm %s0, %s260
          %s262 = sshll.u32 %s253, 4
          %s263 = int_to_ptr.vmem [resolvable:$true] %s262
          %268 = dma.hbm_to_vmem [thread:$0]  %s261, 2048, %s263, %s250, 64, 64, 4
        $region40: #{tpu_custom_call.1} parent=35 // pred_fallthru
          _
      $region36: #{tpu_custom_call.1} parent=5 // pred_fallthru
        _
      %p269 = scmp.le.s32.totalorder 1, %s19
      %p270 = scmp.lt.s32.totalorder %s19, 3
      %p271 = pnand %p269, %p270
      %p272 = pneg %p271
      // Predicated region
      $region41: #{tpu_custom_call.1} parent=5 // pred_check
        _
      $region42: #{tpu_custom_call.1} parent=5 // pred_check_branch
        %274 = sbr.rel (%p271) target = $region44
      $region43: #{tpu_custom_call.1} parent=5 // pred_region
        %s275 = ssub.s32 %s19, 1
        %s276 = sand.u32 %s46, 1
        %s277 = scalar_lea.sflag [#allocation3], %s276
        %s278 = sand.u32 %s46, 1
        %s279 = smul.addr %s278, 128
        %s280 = scalar_lea.vmem [#allocation2], %s279
        // Predicated region
        $region45: #{tpu_custom_call.1} parent=43 // pred_check
          %p281 = pneg %p59
        $region46: #{tpu_custom_call.1} parent=43 // pred_check_branch
          %283 = sbr.rel (%p281) target = $region48
        $region47: #{tpu_custom_call.1} parent=43 // pred_region
          %284 = dma.done %s277, 2048
        $region48: #{tpu_custom_call.1} parent=43 // pred_fallthru
          _
        // Predicated region
        $region49: #{tpu_custom_call.1} parent=43 // pred_check
          %p285 = pneg %p80
        $region50: #{tpu_custom_call.1} parent=43 // pred_check_branch
          %287 = sbr.rel (%p285) target = $region52
        $region51: #{tpu_custom_call.1} parent=43 // pred_region
          %288 = dma.done [#allocation6], 3072
        $region52: #{tpu_custom_call.1} parent=43 // pred_fallthru
          _
        // Predicated region
        $region53: #{tpu_custom_call.1} parent=43 // pred_check
          %p289 = pneg %p122
        $region54: #{tpu_custom_call.1} parent=43 // pred_check_branch
          %291 = sbr.rel (%p289) target = $region56
        $region55: #{tpu_custom_call.1} parent=43 // pred_region
          %292 = dma.done [#allocation6], 1024
        $region56: #{tpu_custom_call.1} parent=43 // pred_fallthru
          _
        %s293 = sand.u32 %s46, 1
        %s294 = scalar_lea.sflag [#allocation3], %s293
        %s295 = sand.u32 %s46, 1
        %s296 = smul.addr %s295, 128
        %s297 = scalar_lea.vmem [#allocation2], %s296
        %p298 = pneg %p59
        %p299 = pneg %p56
        %p300 = pneg %p80
        %p301 = pneg %p77
        %p302 = pneg %p101
        %p303 = pneg %p98
        %p304 = pneg %p122
        %p305 = pneg %p119
        %p306 = pneg %p143
        %p307 = pneg %p140
        %p308 = pneg %p164
        %p309 = pneg %p161
        %p310 = pneg %p192
        %p311 = pneg %p189
        %s312 = sand.u32 %s179, 1
        %s313 = scalar_lea.sflag [#allocation4], %s312
        %s314 = sand.u32 %s179, 1
        %s315 = smul.addr %s314, 96
        %s316 = scalar_lea.vmem [#allocation8], %s315
        %s317 = smul.u32 4, %s29
        %s318 = smul.u32 4, %s29
        %v320 = vld [vmem:[%s280] sm:$0xf]
        %v321 = vld [vmem:[%s280 + $0x4] sm:$0xf]
        %v322 = vld [vmem:[%s280 + $0x8] sm:$0xf]
        %v323 = vld [vmem:[%s280 + $0xc] sm:$0xf]
        %v324 = vld [vmem:[%s280 + $0x10] sm:$0xf]
        %v325 = vld [vmem:[%s280 + $0x14] sm:$0xf]
        %v326 = vld [vmem:[%s280 + $0x18] sm:$0xf]
        %v327 = vld [vmem:[%s280 + $0x1c] sm:$0xf]
        %v328 = vld [vmem:[%s280 + $0x20] sm:$0xf]
        %v329 = vld [vmem:[%s280 + $0x24] sm:$0xf]
        %v330 = vld [vmem:[%s280 + $0x28] sm:$0xf]
        %v331 = vld [vmem:[%s280 + $0x2c] sm:$0xf]
        %v332 = vld [vmem:[%s280 + $0x30] sm:$0xf]
        %v333 = vld [vmem:[%s280 + $0x34] sm:$0xf]
        %v334 = vld [vmem:[%s280 + $0x38] sm:$0xf]
        %v335 = vld [vmem:[%s280 + $0x3c] sm:$0xf]
        %v336 = vld [vmem:[%s280 + $0x40] sm:$0xf]
        %v337 = vld [vmem:[%s280 + $0x44] sm:$0xf]
        %v338 = vld [vmem:[%s280 + $0x48] sm:$0xf]
        %v339 = vld [vmem:[%s280 + $0x4c] sm:$0xf]
        %v340 = vld [vmem:[%s280 + $0x50] sm:$0xf]
        %v341 = vld [vmem:[%s280 + $0x54] sm:$0xf]
        %v342 = vld [vmem:[%s280 + $0x58] sm:$0xf]
        %v343 = vld [vmem:[%s280 + $0x5c] sm:$0xf]
        %v344 = vld [vmem:[#allocation5] sm:$0xf]
        %v345 = vld [vmem:[#allocation5 + $0x4] sm:$0xf]
        %v346 = vld [vmem:[#allocation5 + $0x8] sm:$0xf]
        %v347 = vld [vmem:[#allocation5 + $0xc] sm:$0xf]
        %v348 = vld [vmem:[#allocation5 + $0x10] sm:$0xf]
        %v349 = vld [vmem:[#allocation5 + $0x14] sm:$0xf]
        %v350 = vld [vmem:[#allocation5 + $0x18] sm:$0xf]
        %v351 = vld [vmem:[#allocation5 + $0x1c] sm:$0xf]
        %v352 = vld [vmem:[#allocation5 + $0x20] sm:$0xf]
        %v353 = vld [vmem:[#allocation5 + $0x24] sm:$0xf]
        %v354 = vld [vmem:[#allocation5 + $0x28] sm:$0xf]
        %v355 = vld [vmem:[#allocation5 + $0x2c] sm:$0xf]
        %v356 = vld [vmem:[#allocation5 + $0x30] sm:$0xf]
        %v357 = vld [vmem:[#allocation5 + $0x34] sm:$0xf]
        %v358 = vld [vmem:[#allocation5 + $0x38] sm:$0xf]
        %v359 = vld [vmem:[#allocation5 + $0x3c] sm:$0xf]
        %s360 = scalar_lea.vmem %s280, 16 [#allocation2]
        %v361 = vld [vmem:[%s360] sm:$0xf]
        %v362 = vld [vmem:[%s360 + $0x4] sm:$0xf]
        %v363 = vld [vmem:[%s360 + $0x8] sm:$0xf]
        %v364 = vld [vmem:[%s360 + $0xc] sm:$0xf]
        %v365 = vld [vmem:[%s360 + $0x10] sm:$0xf]
        %v366 = vld [vmem:[%s360 + $0x14] sm:$0xf]
        %v367 = vld [vmem:[%s360 + $0x18] sm:$0xf]
        %v368 = vld [vmem:[%s360 + $0x1c] sm:$0xf]
        %v369 = vld [vmem:[%s360 + $0x20] sm:$0xf]
        %v370 = vld [vmem:[%s360 + $0x24] sm:$0xf]
        %v371 = vld [vmem:[%s360 + $0x28] sm:$0xf]
        %v372 = vld [vmem:[%s360 + $0x2c] sm:$0xf]
        %v373 = vld [vmem:[%s360 + $0x30] sm:$0xf]
        %v374 = vld [vmem:[%s360 + $0x34] sm:$0xf]
        %v375 = vld [vmem:[%s360 + $0x38] sm:$0xf]
        %v376 = vld [vmem:[%s360 + $0x3c] sm:$0xf]
        %v377 = vld [vmem:[%s360 + $0x40] sm:$0xf]
        %v378 = vld [vmem:[%s360 + $0x44] sm:$0xf]
        %v379 = vld [vmem:[%s360 + $0x48] sm:$0xf]
        %v380 = vld [vmem:[%s360 + $0x4c] sm:$0xf]
        %v381 = vld [vmem:[%s360 + $0x50] sm:$0xf]
        %v382 = vld [vmem:[%s360 + $0x54] sm:$0xf]
        %v383 = vld [vmem:[%s360 + $0x58] sm:$0xf]
        %v384 = vld [vmem:[%s360 + $0x5c] sm:$0xf]
        %s385 = scalar_lea.vmem [#allocation5], 64
        %v386 = vld [vmem:[%s385] sm:$0xf]
        %v387 = vld [vmem:[%s385 + $0x4] sm:$0xf]
        %v388 = vld [vmem:[%s385 + $0x8] sm:$0xf]
        %v389 = vld [vmem:[%s385 + $0xc] sm:$0xf]
        %v390 = vld [vmem:[%s385 + $0x10] sm:$0xf]
        %v391 = vld [vmem:[%s385 + $0x14] sm:$0xf]
        %v392 = vld [vmem:[%s385 + $0x18] sm:$0xf]
        %v393 = vld [vmem:[%s385 + $0x1c] sm:$0xf]
        %v394 = vld [vmem:[%s385 + $0x20] sm:$0xf]
        %v395 = vld [vmem:[%s385 + $0x24] sm:$0xf]
        %v396 = vld [vmem:[%s385 + $0x28] sm:$0xf]
        %v397 = vld [vmem:[%s385 + $0x2c] sm:$0xf]
        %v398 = vld [vmem:[%s385 + $0x30] sm:$0xf]
        %v399 = vld [vmem:[%s385 + $0x34] sm:$0xf]
        %v400 = vld [vmem:[%s385 + $0x38] sm:$0xf]
        %v401 = vld [vmem:[%s385 + $0x3c] sm:$0xf]
        %v426 = vunpack.c.l.b16 %v361
        %v427 = vunpack.c.l.b16 %v362
        %v428 = vunpack.c.l.b16 %v363
        %v429 = vunpack.c.l.b16 %v364
        %v430 = vunpack.c.l.b16 %v365
        %v431 = vunpack.c.l.b16 %v366
        %v432 = vunpack.c.l.b16 %v367
        %v433 = vunpack.c.l.b16 %v368
        %v434 = vunpack.c.l.b16 %v369
        %v435 = vunpack.c.l.b16 %v370
        %v436 = vunpack.c.l.b16 %v371
        %v437 = vunpack.c.l.b16 %v372
        %v438 = vunpack.c.l.b16 %v373
        %v439 = vunpack.c.l.b16 %v374
        %v440 = vunpack.c.l.b16 %v375
        %v441 = vunpack.c.l.b16 %v376
        %v442 = vunpack.c.l.b16 %v377
        %v443 = vunpack.c.l.b16 %v378
        %v444 = vunpack.c.l.b16 %v379
        %v445 = vunpack.c.l.b16 %v380
        %v446 = vunpack.c.l.b16 %v381
        %v447 = vunpack.c.l.b16 %v382
        %v448 = vunpack.c.l.b16 %v383
        %v449 = vunpack.c.l.b16 %v384
        %v450 = vpack.c.b16 %v427, %v426
        %v451 = vpack.c.b16 %v429, %v428
        %v452 = vpack.c.b16 %v431, %v430
        %v453 = vpack.c.b16 %v433, %v432
        %v454 = vpack.c.b16 %v435, %v434
        %v455 = vpack.c.b16 %v437, %v436
        %v456 = vpack.c.b16 %v439, %v438
        %v457 = vpack.c.b16 %v441, %v440
        %v458 = vpack.c.b16 %v443, %v442
        %v459 = vpack.c.b16 %v445, %v444
        %v460 = vpack.c.b16 %v447, %v446
        %v461 = vpack.c.b16 %v449, %v448
        %v490 = vunpack.c.l.b16 %v386
        %v491 = vunpack.c.l.b16 %v387
        %v492 = vunpack.c.l.b16 %v388
        %v493 = vunpack.c.l.b16 %v389
        %v494 = vunpack.c.l.b16 %v390
        %v495 = vunpack.c.l.b16 %v391
        %v496 = vunpack.c.l.b16 %v392
        %v497 = vunpack.c.l.b16 %v393
        %v498 = vunpack.c.l.b16 %v394
        %v499 = vunpack.c.l.b16 %v395
        %v500 = vunpack.c.l.b16 %v396
        %v501 = vunpack.c.l.b16 %v397
        %v502 = vunpack.c.l.b16 %v398
        %v503 = vunpack.c.l.b16 %v399
        %v504 = vunpack.c.l.b16 %v400
        %v505 = vunpack.c.l.b16 %v401
        %v506 = vpack.c.b16 %v491, %v490
        %v507 = vpack.c.b16 %v493, %v492
        %v508 = vpack.c.b16 %v495, %v494
        %v509 = vpack.c.b16 %v497, %v496
        %v510 = vpack.c.b16 %v499, %v498
        %v511 = vpack.c.b16 %v501, %v500
        %v512 = vpack.c.b16 %v503, %v502
        %v513 = vpack.c.b16 %v505, %v504
        %522 = vmatprep.subr.bf16.mxu0 0
        %523 = vmatpush1.bf16.msra.mxu0 %v506
        %524 = vmatprep.subr.bf16.mxu0 0
        %525 = vmatpush1.bf16.msra.mxu0 %v507
        %526 = vmatprep.subr.bf16.mxu0 0
        %527 = vmatpush1.bf16.msra.mxu0 %v508
        %528 = vmatprep.subr.bf16.mxu0 0
        %529 = vmatpush1.bf16.msra.mxu0 %v509
        %530 = vmatprep.subr.bf16.mxu0 0
        %531 = vmatpush1.bf16.msra.mxu0 %v510
        %532 = vmatprep.subr.bf16.mxu0 0
        %533 = vmatpush1.bf16.msra.mxu0 %v511
        %534 = vmatprep.subr.bf16.mxu0 0
        %535 = vmatpush1.bf16.msra.mxu0 %v512
        %536 = vmatprep.subr.bf16.mxu0 0
        %537 = vmatpush1.bf16.msra.mxu0 %v513
        %538 = vmatprep.subr.bf16.mxu0 0
        %539 = vmatpush1.bf16.msra.mxu0 0
        %540 = vmatprep.subr.bf16.mxu0 0
        %541 = vmatpush1.bf16.msra.mxu0 0
        %542 = vmatprep.subr.bf16.mxu0 0
        %543 = vmatpush1.bf16.msra.mxu0 0
        %544 = vmatprep.subr.bf16.mxu0 0
        %545 = vmatpush1.bf16.msra.mxu0 0
        %546 = vmatprep.subr.bf16.mxu0 0
        %547 = vmatpush1.bf16.msra.mxu0 0
        %548 = vmatprep.subr.bf16.mxu0 0
        %549 = vmatpush1.bf16.msra.mxu0 0
        %550 = vmatprep.subr.bf16.mxu0 0
        %551 = vmatpush1.bf16.msra.mxu0 0
        %552 = vmatprep.subr.bf16.mxu0 0
        %553 = vmatpush1.bf16.msra.mxu0 0
        %554 = vmatprep.mubr.bf16.mxu0 0
        %555 = vmatmul.mubr.bf16.gmra.mrb[0].mxu0 %v450
        %v556 = vpop.f32.mrb[0].mxu0
        %v557 = vadd.f32 0.0, %v556
        %v558 = vpop.f32.mrb[0].mxu0
        %v559 = vpop.f32.mrb[0].mxu0
        %v560 = vadd.f32 0.0, %v559
        %v561 = vpop.f32.mrb[0].mxu0
        %562 = vmatprep.mubr.bf16.mxu0 0
        %563 = vmatmul.mubr.bf16.gmra.mrb[0].mxu0 %v451
        %v564 = vpop.f32.mrb[0].mxu0
        %v565 = vadd.f32 0.0, %v564
        %v566 = vpop.f32.mrb[0].mxu0
        %v567 = vpop.f32.mrb[0].mxu0
        %v568 = vadd.f32 0.0, %v567
        %v569 = vpop.f32.mrb[0].mxu0
        %570 = vmatprep.mubr.bf16.mxu0 0
        %571 = vmatmul.mubr.bf16.gmra.mrb[0].mxu0 %v452
        %v572 = vpop.f32.mrb[0].mxu0
        %v573 = vadd.f32 0.0, %v572
        %v574 = vpop.f32.mrb[0].mxu0
        %v575 = vpop.f32.mrb[0].mxu0
        %v576 = vadd.f32 0.0, %v575
        %v577 = vpop.f32.mrb[0].mxu0
        %578 = vmatprep.mubr.bf16.mxu0 0
        %579 = vmatmul.mubr.bf16.gmra.mrb[0].mxu0 %v453
        %v580 = vpop.f32.mrb[0].mxu0
        %v581 = vadd.f32 0.0, %v580
        %v582 = vpop.f32.mrb[0].mxu0
        %v583 = vpop.f32.mrb[0].mxu0
        %v584 = vadd.f32 0.0, %v583
        %v585 = vpop.f32.mrb[0].mxu0
        %586 = vmatprep.mubr.bf16.mxu0 0
        %587 = vmatmul.mubr.bf16.gmra.mrb[0].mxu0 %v454
        %v588 = vpop.f32.mrb[0].mxu0
        %v589 = vadd.f32 0.0, %v588
        %v590 = vpop.f32.mrb[0].mxu0
        %v591 = vpop.f32.mrb[0].mxu0
        %v592 = vadd.f32 0.0, %v591
        %v593 = vpop.f32.mrb[0].mxu0
        %594 = vmatprep.mubr.bf16.mxu0 0
        %595 = vmatmul.mubr.bf16.gmra.mrb[0].mxu0 %v455
        %v596 = vpop.f32.mrb[0].mxu0
        %v597 = vadd.f32 0.0, %v596
        %v598 = vpop.f32.mrb[0].mxu0
        %v599 = vpop.f32.mrb[0].mxu0
        %v600 = vadd.f32 0.0, %v599
        %v601 = vpop.f32.mrb[0].mxu0
        %602 = vmatprep.mubr.bf16.mxu0 0
        %603 = vmatmul.mubr.bf16.gmra.mrb[0].mxu0 %v456
        %v604 = vpop.f32.mrb[0].mxu0
        %v605 = vadd.f32 0.0, %v604
        %v606 = vpop.f32.mrb[0].mxu0
        %v607 = vpop.f32.mrb[0].mxu0
        %v608 = vadd.f32 0.0, %v607
        %v609 = vpop.f32.mrb[0].mxu0
        %610 = vmatprep.mubr.bf16.mxu0 0
        %611 = vmatmul.mubr.bf16.gmra.mrb[0].mxu0 %v457
        %v612 = vpop.f32.mrb[0].mxu0
        %v613 = vadd.f32 0.0, %v612
        %v614 = vpop.f32.mrb[0].mxu0
        %v615 = vpop.f32.mrb[0].mxu0
        %v616 = vadd.f32 0.0, %v615
        %v617 = vpop.f32.mrb[0].mxu0
        %618 = vmatprep.mubr.bf16.mxu0 0
        %619 = vmatmul.mubr.bf16.gmra.mrb[0].mxu0 %v458
        %v620 = vpop.f32.mrb[0].mxu0
        %v621 = vadd.f32 0.0, %v620
        %v622 = vpop.f32.mrb[0].mxu0
        %v623 = vpop.f32.mrb[0].mxu0
        %v624 = vadd.f32 0.0, %v623
        %v625 = vpop.f32.mrb[0].mxu0
        %626 = vmatprep.mubr.bf16.mxu0 0
        %627 = vmatmul.mubr.bf16.gmra.mrb[0].mxu0 %v459
        %v628 = vpop.f32.mrb[0].mxu0
        %v629 = vadd.f32 0.0, %v628
        %v630 = vpop.f32.mrb[0].mxu0
        %v631 = vpop.f32.mrb[0].mxu0
        %v632 = vadd.f32 0.0, %v631
        %v633 = vpop.f32.mrb[0].mxu0
        %634 = vmatprep.mubr.bf16.mxu0 0
        %635 = vmatmul.mubr.bf16.gmra.mrb[0].mxu0 %v460
        %v636 = vpop.f32.mrb[0].mxu0
        %v637 = vadd.f32 0.0, %v636
        %v638 = vpop.f32.mrb[0].mxu0
        %v639 = vpop.f32.mrb[0].mxu0
        %v640 = vadd.f32 0.0, %v639
        %v641 = vpop.f32.mrb[0].mxu0
        %642 = vmatprep.mubr.bf16.mxu0 0
        %643 = vmatmul.mubr.bf16.gmra.mrb[0].mxu0 %v461
        %v644 = vpop.f32.mrb[0].mxu0
        %v645 = vadd.f32 0.0, %v644
        %v646 = vpop.f32.mrb[0].mxu0
        %v647 = vpop.f32.mrb[0].mxu0
        %v648 = vadd.f32 0.0, %v647
        %v649 = vpop.f32.mrb[0].mxu0
        %650 = vdwg.mxu0
        %v675 = vunpack.c.l.b16 %v320
        %v676 = vunpack.c.l.b16 %v321
        %v677 = vunpack.c.l.b16 %v322
        %v678 = vunpack.c.l.b16 %v323
        %v679 = vunpack.c.l.b16 %v324
        %v680 = vunpack.c.l.b16 %v325
        %v681 = vunpack.c.l.b16 %v326
        %v682 = vunpack.c.l.b16 %v327
        %v683 = vunpack.c.l.b16 %v328
        %v684 = vunpack.c.l.b16 %v329
        %v685 = vunpack.c.l.b16 %v330
        %v686 = vunpack.c.l.b16 %v331
        %v687 = vunpack.c.l.b16 %v332
        %v688 = vunpack.c.l.b16 %v333
        %v689 = vunpack.c.l.b16 %v334
        %v690 = vunpack.c.l.b16 %v335
        %v691 = vunpack.c.l.b16 %v336
        %v692 = vunpack.c.l.b16 %v337
        %v693 = vunpack.c.l.b16 %v338
        %v694 = vunpack.c.l.b16 %v339
        %v695 = vunpack.c.l.b16 %v340
        %v696 = vunpack.c.l.b16 %v341
        %v697 = vunpack.c.l.b16 %v342
        %v698 = vunpack.c.l.b16 %v343
        %v699 = vpack.c.b16 %v676, %v675
        %v700 = vpack.c.b16 %v678, %v677
        %v701 = vpack.c.b16 %v680, %v679
        %v702 = vpack.c.b16 %v682, %v681
        %v703 = vpack.c.b16 %v684, %v683
        %v704 = vpack.c.b16 %v686, %v685
        %v705 = vpack.c.b16 %v688, %v687
        %v706 = vpack.c.b16 %v690, %v689
        %v707 = vpack.c.b16 %v692, %v691
        %v708 = vpack.c.b16 %v694, %v693
        %v709 = vpack.c.b16 %v696, %v695
        %v710 = vpack.c.b16 %v698, %v697
        %v739 = vunpack.c.l.b16 %v344
        %v740 = vunpack.c.l.b16 %v345
        %v741 = vunpack.c.l.b16 %v346
        %v742 = vunpack.c.l.b16 %v347
        %v743 = vunpack.c.l.b16 %v348
        %v744 = vunpack.c.l.b16 %v349
        %v745 = vunpack.c.l.b16 %v350
        %v746 = vunpack.c.l.b16 %v351
        %v747 = vunpack.c.l.b16 %v352
        %v748 = vunpack.c.l.b16 %v353
        %v749 = vunpack.c.l.b16 %v354
        %v750 = vunpack.c.l.b16 %v355
        %v751 = vunpack.c.l.b16 %v356
        %v752 = vunpack.c.l.b16 %v357
        %v753 = vunpack.c.l.b16 %v358
        %v754 = vunpack.c.l.b16 %v359
        %v755 = vpack.c.b16 %v740, %v739
        %v756 = vpack.c.b16 %v742, %v741
        %v757 = vpack.c.b16 %v744, %v743
        %v758 = vpack.c.b16 %v746, %v745
        %v759 = vpack.c.b16 %v748, %v747
        %v760 = vpack.c.b16 %v750, %v749
        %v761 = vpack.c.b16 %v752, %v751
        %v762 = vpack.c.b16 %v754, %v753
        %771 = vmatprep.subr.bf16.mxu0 0
        %772 = vmatpush1.bf16.msra.mxu0 %v755
        %773 = vmatprep.subr.bf16.mxu0 0
        %774 = vmatpush1.bf16.msra.mxu0 %v756
        %775 = vmatprep.subr.bf16.mxu0 0
        %776 = vmatpush1.bf16.msra.mxu0 %v757
        %777 = vmatprep.subr.bf16.mxu0 0
        %778 = vmatpush1.bf16.msra.mxu0 %v758
        %779 = vmatprep.subr.bf16.mxu0 0
        %780 = vmatpush1.bf16.msra.mxu0 %v759
        %781 = vmatprep.subr.bf16.mxu0 0
        %782 = vmatpush1.bf16.msra.mxu0 %v760
        %783 = vmatprep.subr.bf16.mxu0 0
        %784 = vmatpush1.bf16.msra.mxu0 %v761
        %785 = vmatprep.subr.bf16.mxu0 0
        %786 = vmatpush1.bf16.msra.mxu0 %v762
        %787 = vmatprep.subr.bf16.mxu0 0
        %788 = vmatpush1.bf16.msra.mxu0 0
        %789 = vmatprep.subr.bf16.mxu0 0
        %790 = vmatpush1.bf16.msra.mxu0 0
        %791 = vmatprep.subr.bf16.mxu0 0
        %792 = vmatpush1.bf16.msra.mxu0 0
        %793 = vmatprep.subr.bf16.mxu0 0
        %794 = vmatpush1.bf16.msra.mxu0 0
        %795 = vmatprep.subr.bf16.mxu0 0
        %796 = vmatpush1.bf16.msra.mxu0 0
        %797 = vmatprep.subr.bf16.mxu0 0
        %798 = vmatpush1.bf16.msra.mxu0 0
        %799 = vmatprep.subr.bf16.mxu0 0
        %800 = vmatpush1.bf16.msra.mxu0 0
        %801 = vmatprep.subr.bf16.mxu0 0
        %802 = vmatpush1.bf16.msra.mxu0 0
        %803 = vmatprep.mubr.bf16.mxu0 0
        %804 = vmatmul.mubr.bf16.gmra.mrb[0].mxu0 %v699
        %v805 = vpop.f32.mrb[0].mxu0
        %v806 = vadd.f32 %v557, %v805
        %v807 = vpop.f32.mrb[0].mxu0
        %v808 = vpop.f32.mrb[0].mxu0
        %v809 = vadd.f32 %v560, %v808
        %v810 = vpop.f32.mrb[0].mxu0
        %811 = vmatprep.mubr.bf16.mxu0 0
        %812 = vmatmul.mubr.bf16.gmra.mrb[0].mxu0 %v700
        %v813 = vpop.f32.mrb[0].mxu0
        %v814 = vadd.f32 %v565, %v813
        %v815 = vpop.f32.mrb[0].mxu0
        %v816 = vpop.f32.mrb[0].mxu0
        %v817 = vadd.f32 %v568, %v816
        %v818 = vpop.f32.mrb[0].mxu0
        %819 = vmatprep.mubr.bf16.mxu0 0
        %820 = vmatmul.mubr.bf16.gmra.mrb[0].mxu0 %v701
        %v821 = vpop.f32.mrb[0].mxu0
        %v822 = vadd.f32 %v573, %v821
        %v823 = vpop.f32.mrb[0].mxu0
        %v824 = vpop.f32.mrb[0].mxu0
        %v825 = vadd.f32 %v576, %v824
        %v826 = vpop.f32.mrb[0].mxu0
        %827 = vmatprep.mubr.bf16.mxu0 0
        %828 = vmatmul.mubr.bf16.gmra.mrb[0].mxu0 %v702
        %v829 = vpop.f32.mrb[0].mxu0
        %v830 = vadd.f32 %v581, %v829
        %v831 = vpop.f32.mrb[0].mxu0
        %v832 = vpop.f32.mrb[0].mxu0
        %v833 = vadd.f32 %v584, %v832
        %v834 = vpop.f32.mrb[0].mxu0
        %835 = vmatprep.mubr.bf16.mxu0 0
        %836 = vmatmul.mubr.bf16.gmra.mrb[0].mxu0 %v703
        %v837 = vpop.f32.mrb[0].mxu0
        %v838 = vadd.f32 %v589, %v837
        %v839 = vpop.f32.mrb[0].mxu0
        %v840 = vpop.f32.mrb[0].mxu0
        %v841 = vadd.f32 %v592, %v840
        %v842 = vpop.f32.mrb[0].mxu0
        %843 = vmatprep.mubr.bf16.mxu0 0
        %844 = vmatmul.mubr.bf16.gmra.mrb[0].mxu0 %v704
        %v845 = vpop.f32.mrb[0].mxu0
        %v846 = vadd.f32 %v597, %v845
        %v847 = vpop.f32.mrb[0].mxu0
        %v848 = vpop.f32.mrb[0].mxu0
        %v849 = vadd.f32 %v600, %v848
        %v850 = vpop.f32.mrb[0].mxu0
        %851 = vmatprep.mubr.bf16.mxu0 0
        %852 = vmatmul.mubr.bf16.gmra.mrb[0].mxu0 %v705
        %v853 = vpop.f32.mrb[0].mxu0
        %v854 = vadd.f32 %v605, %v853
        %v855 = vpop.f32.mrb[0].mxu0
        %v856 = vpop.f32.mrb[0].mxu0
        %v857 = vadd.f32 %v608, %v856
        %v858 = vpop.f32.mrb[0].mxu0
        %859 = vmatprep.mubr.bf16.mxu0 0
        %860 = vmatmul.mubr.bf16.gmra.mrb[0].mxu0 %v706
        %v861 = vpop.f32.mrb[0].mxu0
        %v862 = vadd.f32 %v613, %v861
        %v863 = vpop.f32.mrb[0].mxu0
        %v864 = vpop.f32.mrb[0].mxu0
        %v865 = vadd.f32 %v616, %v864
        %v866 = vpop.f32.mrb[0].mxu0
        %867 = vmatprep.mubr.bf16.mxu0 0
        %868 = vmatmul.mubr.bf16.gmra.mrb[0].mxu0 %v707
        %v869 = vpop.f32.mrb[0].mxu0
        %v870 = vadd.f32 %v621, %v869
        %v871 = vpop.f32.mrb[0].mxu0
        %v872 = vpop.f32.mrb[0].mxu0
        %v873 = vadd.f32 %v624, %v872
        %v874 = vpop.f32.mrb[0].mxu0
        %875 = vmatprep.mubr.bf16.mxu0 0
        %876 = vmatmul.mubr.bf16.gmra.mrb[0].mxu0 %v708
        %v877 = vpop.f32.mrb[0].mxu0
        %v878 = vadd.f32 %v629, %v877
        %v879 = vpop.f32.mrb[0].mxu0
        %v880 = vpop.f32.mrb[0].mxu0
        %v881 = vadd.f32 %v632, %v880
        %v882 = vpop.f32.mrb[0].mxu0
        %883 = vmatprep.mubr.bf16.mxu0 0
        %884 = vmatmul.mubr.bf16.gmra.mrb[0].mxu0 %v709
        %v885 = vpop.f32.mrb[0].mxu0
        %v886 = vadd.f32 %v637, %v885
        %v887 = vpop.f32.mrb[0].mxu0
        %v888 = vpop.f32.mrb[0].mxu0
        %v889 = vadd.f32 %v640, %v888
        %v890 = vpop.f32.mrb[0].mxu0
        %891 = vmatprep.mubr.bf16.mxu0 0
        %892 = vmatmul.mubr.bf16.gmra.mrb[0].mxu0 %v710
        %v893 = vpop.f32.mrb[0].mxu0
        %v894 = vadd.f32 %v645, %v893
        %v895 = vpop.f32.mrb[0].mxu0
        %v896 = vpop.f32.mrb[0].mxu0
        %v897 = vadd.f32 %v648, %v896
        %v898 = vpop.f32.mrb[0].mxu0
        %899 = vdwg.mxu0
        %s900 = scalar_lea.vmem %s280, 32 [#allocation2]
        %v901 = vld [vmem:[%s900] sm:$0xf]
        %v902 = vld [vmem:[%s900 + $0x4] sm:$0xf]
        %v903 = vld [vmem:[%s900 + $0x8] sm:$0xf]
        %v904 = vld [vmem:[%s900 + $0xc] sm:$0xf]
        %v905 = vld [vmem:[%s900 + $0x10] sm:$0xf]
        %v906 = vld [vmem:[%s900 + $0x14] sm:$0xf]
        %v907 = vld [vmem:[%s900 + $0x18] sm:$0xf]
        %v908 = vld [vmem:[%s900 + $0x1c] sm:$0xf]
        %v909 = vld [vmem:[%s900 + $0x20] sm:$0xf]
        %v910 = vld [vmem:[%s900 + $0x24] sm:$0xf]
        %v911 = vld [vmem:[%s900 + $0x28] sm:$0xf]
        %v912 = vld [vmem:[%s900 + $0x2c] sm:$0xf]
        %v913 = vld [vmem:[%s900 + $0x30] sm:$0xf]
        %v914 = vld [vmem:[%s900 + $0x34] sm:$0xf]
        %v915 = vld [vmem:[%s900 + $0x38] sm:$0xf]
        %v916 = vld [vmem:[%s900 + $0x3c] sm:$0xf]
        %v917 = vld [vmem:[%s900 + $0x40] sm:$0xf]
        %v918 = vld [vmem:[%s900 + $0x44] sm:$0xf]
        %v919 = vld [vmem:[%s900 + $0x48] sm:$0xf]
        %v920 = vld [vmem:[%s900 + $0x4c] sm:$0xf]
        %v921 = vld [vmem:[%s900 + $0x50] sm:$0xf]
        %v922 = vld [vmem:[%s900 + $0x54] sm:$0xf]
        %v923 = vld [vmem:[%s900 + $0x58] sm:$0xf]
        %v924 = vld [vmem:[%s900 + $0x5c] sm:$0xf]
        %s925 = scalar_lea.vmem [#allocation5], 128
        %v926 = vld [vmem:[%s925] sm:$0xf]
        %v927 = vld [vmem:[%s925 + $0x4] sm:$0xf]
        %v928 = vld [vmem:[%s925 + $0x8] sm:$0xf]
        %v929 = vld [vmem:[%s925 + $0xc] sm:$0xf]
        %v930 = vld [vmem:[%s925 + $0x10] sm:$0xf]
        %v931 = vld [vmem:[%s925 + $0x14] sm:$0xf]
        %v932 = vld [vmem:[%s925 + $0x18] sm:$0xf]
        %v933 = vld [vmem:[%s925 + $0x1c] sm:$0xf]
        %v934 = vld [vmem:[%s925 + $0x20] sm:$0xf]
        %v935 = vld [vmem:[%s925 + $0x24] sm:$0xf]
        %v936 = vld [vmem:[%s925 + $0x28] sm:$0xf]
        %v937 = vld [vmem:[%s925 + $0x2c] sm:$0xf]
        %v938 = vld [vmem:[%s925 + $0x30] sm:$0xf]
        %v939 = vld [vmem:[%s925 + $0x34] sm:$0xf]
        %v940 = vld [vmem:[%s925 + $0x38] sm:$0xf]
        %v941 = vld [vmem:[%s925 + $0x3c] sm:$0xf]
        %v966 = vunpack.c.l.b16 %v901
        %v967 = vunpack.c.l.b16 %v902
        %v968 = vunpack.c.l.b16 %v903
        %v969 = vunpack.c.l.b16 %v904
        %v970 = vunpack.c.l.b16 %v905
        %v971 = vunpack.c.l.b16 %v906
        %v972 = vunpack.c.l.b16 %v907
        %v973 = vunpack.c.l.b16 %v908
        %v974 = vunpack.c.l.b16 %v909
        %v975 = vunpack.c.l.b16 %v910
        %v976 = vunpack.c.l.b16 %v911
        %v977 = vunpack.c.l.b16 %v912
        %v978 = vunpack.c.l.b16 %v913
        %v979 = vunpack.c.l.b16 %v914
        %v980 = vunpack.c.l.b16 %v915
        %v981 = vunpack.c.l.b16 %v916
        %v982 = vunpack.c.l.b16 %v917
        %v983 = vunpack.c.l.b16 %v918
        %v984 = vunpack.c.l.b16 %v919
        %v985 = vunpack.c.l.b16 %v920
        %v986 = vunpack.c.l.b16 %v921
        %v987 = vunpack.c.l.b16 %v922
        %v988 = vunpack.c.l.b16 %v923
        %v989 = vunpack.c.l.b16 %v924
        %v990 = vpack.c.b16 %v967, %v966
        %v991 = vpack.c.b16 %v969, %v968
        %v992 = vpack.c.b16 %v971, %v970
        %v993 = vpack.c.b16 %v973, %v972
        %v994 = vpack.c.b16 %v975, %v974
        %v995 = vpack.c.b16 %v977, %v976
        %v996 = vpack.c.b16 %v979, %v978
        %v997 = vpack.c.b16 %v981, %v980
        %v998 = vpack.c.b16 %v983, %v982
        %v999 = vpack.c.b16 %v985, %v984
        %v1000 = vpack.c.b16 %v987, %v986
        %v1001 = vpack.c.b16 %v989, %v988
        %v1030 = vunpack.c.l.b16 %v926
        %v1031 = vunpack.c.l.b16 %v927
        %v1032 = vunpack.c.l.b16 %v928
        %v1033 = vunpack.c.l.b16 %v929
        %v1034 = vunpack.c.l.b16 %v930
        %v1035 = vunpack.c.l.b16 %v931
        %v1036 = vunpack.c.l.b16 %v932
        %v1037 = vunpack.c.l.b16 %v933
        %v1038 = vunpack.c.l.b16 %v934
        %v1039 = vunpack.c.l.b16 %v935
        %v1040 = vunpack.c.l.b16 %v936
        %v1041 = vunpack.c.l.b16 %v937
        %v1042 = vunpack.c.l.b16 %v938
        %v1043 = vunpack.c.l.b16 %v939
        %v1044 = vunpack.c.l.b16 %v940
        %v1045 = vunpack.c.l.b16 %v941
        %v1046 = vpack.c.b16 %v1031, %v1030
        %v1047 = vpack.c.b16 %v1033, %v1032
        %v1048 = vpack.c.b16 %v1035, %v1034
        %v1049 = vpack.c.b16 %v1037, %v1036
        %v1050 = vpack.c.b16 %v1039, %v1038
        %v1051 = vpack.c.b16 %v1041, %v1040
        %v1052 = vpack.c.b16 %v1043, %v1042
        %v1053 = vpack.c.b16 %v1045, %v1044
        %1062 = vmatprep.subr.bf16.mxu0 0
        %1063 = vmatpush1.bf16.msra.mxu0 %v1046
        %1064 = vmatprep.subr.bf16.mxu0 0
        %1065 = vmatpush1.bf16.msra.mxu0 %v1047
        %1066 = vmatprep.subr.bf16.mxu0 0
        %1067 = vmatpush1.bf16.msra.mxu0 %v1048
        %1068 = vmatprep.subr.bf16.mxu0 0
        %1069 = vmatpush1.bf16.msra.mxu0 %v1049
        %1070 = vmatprep.subr.bf16.mxu0 0
        %1071 = vmatpush1.bf16.msra.mxu0 %v1050
        %1072 = vmatprep.subr.bf16.mxu0 0
        %1073 = vmatpush1.bf16.msra.mxu0 %v1051
        %1074 = vmatprep.subr.bf16.mxu0 0
        %1075 = vmatpush1.bf16.msra.mxu0 %v1052
        %1076 = vmatprep.subr.bf16.mxu0 0
        %1077 = vmatpush1.bf16.msra.mxu0 %v1053
        %1078 = vmatprep.subr.bf16.mxu0 0
        %1079 = vmatpush1.bf16.msra.mxu0 0
        %1080 = vmatprep.subr.bf16.mxu0 0
        %1081 = vmatpush1.bf16.msra.mxu0 0
        %1082 = vmatprep.subr.bf16.mxu0 0
        %1083 = vmatpush1.bf16.msra.mxu0 0
        %1084 = vmatprep.subr.bf16.mxu0 0
        %1085 = vmatpush1.bf16.msra.mxu0 0
        %1086 = vmatprep.subr.bf16.mxu0 0
        %1087 = vmatpush1.bf16.msra.mxu0 0
        %1088 = vmatprep.subr.bf16.mxu0 0
        %1089 = vmatpush1.bf16.msra.mxu0 0
        %1090 = vmatprep.subr.bf16.mxu0 0
        %1091 = vmatpush1.bf16.msra.mxu0 0
        %1092 = vmatprep.subr.bf16.mxu0 0
        %1093 = vmatpush1.bf16.msra.mxu0 0
        %1094 = vmatprep.mubr.bf16.mxu0 0
        %1095 = vmatmul.mubr.bf16.gmra.mrb[0].mxu0 %v990
        %v1096 = vpop.f32.mrb[0].mxu0
        %v1097 = vadd.f32 0.0, %v1096
        %v1098 = vpop.f32.mrb[0].mxu0
        %v1099 = vpop.f32.mrb[0].mxu0
        %v1100 = vadd.f32 0.0, %v1099
        %v1101 = vpop.f32.mrb[0].mxu0
        %1102 = vmatprep.mubr.bf16.mxu0 0
        %1103 = vmatmul.mubr.bf16.gmra.mrb[0].mxu0 %v991
        %v1104 = vpop.f32.mrb[0].mxu0
        %v1105 = vadd.f32 0.0, %v1104
        %v1106 = vpop.f32.mrb[0].mxu0
        %v1107 = vpop.f32.mrb[0].mxu0
        %v1108 = vadd.f32 0.0, %v1107
        %v1109 = vpop.f32.mrb[0].mxu0
        %1110 = vmatprep.mubr.bf16.mxu0 0
        %1111 = vmatmul.mubr.bf16.gmra.mrb[0].mxu0 %v992
        %v1112 = vpop.f32.mrb[0].mxu0
        %v1113 = vadd.f32 0.0, %v1112
        %v1114 = vpop.f32.mrb[0].mxu0
        %v1115 = vpop.f32.mrb[0].mxu0
        %v1116 = vadd.f32 0.0, %v1115
        %v1117 = vpop.f32.mrb[0].mxu0
        %1118 = vmatprep.mubr.bf16.mxu0 0
        %1119 = vmatmul.mubr.bf16.gmra.mrb[0].mxu0 %v993
        %v1120 = vpop.f32.mrb[0].mxu0
        %v1121 = vadd.f32 0.0, %v1120
        %v1122 = vpop.f32.mrb[0].mxu0
        %v1123 = vpop.f32.mrb[0].mxu0
        %v1124 = vadd.f32 0.0, %v1123
        %v1125 = vpop.f32.mrb[0].mxu0
        %1126 = vmatprep.mubr.bf16.mxu0 0
        %1127 = vmatmul.mubr.bf16.gmra.mrb[0].mxu0 %v994
        %v1128 = vpop.f32.mrb[0].mxu0
        %v1129 = vadd.f32 0.0, %v1128
        %v1130 = vpop.f32.mrb[0].mxu0
        %v1131 = vpop.f32.mrb[0].mxu0
        %v1132 = vadd.f32 0.0, %v1131
        %v1133 = vpop.f32.mrb[0].mxu0
        %1134 = vmatprep.mubr.bf16.mxu0 0
        %1135 = vmatmul.mubr.bf16.gmra.mrb[0].mxu0 %v995
        %v1136 = vpop.f32.mrb[0].mxu0
        %v1137 = vadd.f32 0.0, %v1136
        %v1138 = vpop.f32.mrb[0].mxu0
        %v1139 = vpop.f32.mrb[0].mxu0
        %v1140 = vadd.f32 0.0, %v1139
        %v1141 = vpop.f32.mrb[0].mxu0
        %1142 = vmatprep.mubr.bf16.mxu0 0
        %1143 = vmatmul.mubr.bf16.gmra.mrb[0].mxu0 %v996
        %v1144 = vpop.f32.mrb[0].mxu0
        %v1145 = vadd.f32 0.0, %v1144
        %v1146 = vpop.f32.mrb[0].mxu0
        %v1147 = vpop.f32.mrb[0].mxu0
        %v1148 = vadd.f32 0.0, %v1147
        %v1149 = vpop.f32.mrb[0].mxu0
        %1150 = vmatprep.mubr.bf16.mxu0 0
        %1151 = vmatmul.mubr.bf16.gmra.mrb[0].mxu0 %v997
        %v1152 = vpop.f32.mrb[0].mxu0
        %v1153 = vadd.f32 0.0, %v1152
        %v1154 = vpop.f32.mrb[0].mxu0
        %v1155 = vpop.f32.mrb[0].mxu0
        %v1156 = vadd.f32 0.0, %v1155
        %v1157 = vpop.f32.mrb[0].mxu0
        %1158 = vmatprep.mubr.bf16.mxu0 0
        %1159 = vmatmul.mubr.bf16.gmra.mrb[0].mxu0 %v998
        %v1160 = vpop.f32.mrb[0].mxu0
        %v1161 = vadd.f32 0.0, %v1160
        %v1162 = vpop.f32.mrb[0].mxu0
        %v1163 = vpop.f32.mrb[0].mxu0
        %v1164 = vadd.f32 0.0, %v1163
        %v1165 = vpop.f32.mrb[0].mxu0
        %1166 = vmatprep.mubr.bf16.mxu0 0
        %1167 = vmatmul.mubr.bf16.gmra.mrb[0].mxu0 %v999
        %v1168 = vpop.f32.mrb[0].mxu0
        %v1169 = vadd.f32 0.0, %v1168
        %v1170 = vpop.f32.mrb[0].mxu0
        %v1171 = vpop.f32.mrb[0].mxu0
        %v1172 = vadd.f32 0.0, %v1171
        %v1173 = vpop.f32.mrb[0].mxu0
        %1174 = vmatprep.mubr.bf16.mxu0 0
        %1175 = vmatmul.mubr.bf16.gmra.mrb[0].mxu0 %v1000
        %v1176 = vpop.f32.mrb[0].mxu0
        %v1177 = vadd.f32 0.0, %v1176
        %v1178 = vpop.f32.mrb[0].mxu0
        %v1179 = vpop.f32.mrb[0].mxu0
        %v1180 = vadd.f32 0.0, %v1179
        %v1181 = vpop.f32.mrb[0].mxu0
        %1182 = vmatprep.mubr.bf16.mxu0 0
        %1183 = vmatmul.mubr.bf16.gmra.mrb[0].mxu0 %v1001
        %v1184 = vpop.f32.mrb[0].mxu0
        %v1185 = vadd.f32 0.0, %v1184
        %v1186 = vpop.f32.mrb[0].mxu0
        %v1187 = vpop.f32.mrb[0].mxu0
        %v1188 = vadd.f32 0.0, %v1187
        %v1189 = vpop.f32.mrb[0].mxu0
        %1190 = vdwg.mxu0
        %v1191 = vadd.f32 %v806, %v1097
        %v1192 = vadd.f32 %v809, %v1100
        %v1193 = vadd.f32 %v814, %v1105
        %v1194 = vadd.f32 %v817, %v1108
        %v1195 = vadd.f32 %v822, %v1113
        %v1196 = vadd.f32 %v825, %v1116
        %v1197 = vadd.f32 %v830, %v1121
        %v1198 = vadd.f32 %v833, %v1124
        %v1199 = vadd.f32 %v838, %v1129
        %v1200 = vadd.f32 %v841, %v1132
        %v1201 = vadd.f32 %v846, %v1137
        %v1202 = vadd.f32 %v849, %v1140
        %v1203 = vadd.f32 %v854, %v1145
        %v1204 = vadd.f32 %v857, %v1148
        %v1205 = vadd.f32 %v862, %v1153
        %v1206 = vadd.f32 %v865, %v1156
        %v1207 = vadd.f32 %v870, %v1161
        %v1208 = vadd.f32 %v873, %v1164
        %v1209 = vadd.f32 %v878, %v1169
        %v1210 = vadd.f32 %v881, %v1172
        %v1211 = vadd.f32 %v886, %v1177
        %v1212 = vadd.f32 %v889, %v1180
        %v1213 = vadd.f32 %v894, %v1185
        %v1214 = vadd.f32 %v897, %v1188
        %v1215 = vld [vmem:[%s2] sm:$0x1]
        %v1217 = vlaneseq
        %v1218 = vshrl.u32 %v1217, 7
        %v1219 = vsub.s32 0, %v1218
        %v1220 = vrot.slane %v1215, %v1219
        %v1222 = vadd.f32 %v1191, %v1220
        %v1223 = vadd.f32 %v1192, %v1220
        %v1224 = vadd.f32 %v1193, %v1220
        %v1225 = vadd.f32 %v1194, %v1220
        %v1226 = vadd.f32 %v1195, %v1220
        %v1227 = vadd.f32 %v1196, %v1220
        %v1228 = vadd.f32 %v1197, %v1220
        %v1229 = vadd.f32 %v1198, %v1220
        %v1230 = vadd.f32 %v1199, %v1220
        %v1231 = vadd.f32 %v1200, %v1220
        %v1232 = vadd.f32 %v1201, %v1220
        %v1233 = vadd.f32 %v1202, %v1220
        %v1234 = vadd.f32 %v1203, %v1220
        %v1235 = vadd.f32 %v1204, %v1220
        %v1236 = vadd.f32 %v1205, %v1220
        %v1237 = vadd.f32 %v1206, %v1220
        %v1238 = vadd.f32 %v1207, %v1220
        %v1239 = vadd.f32 %v1208, %v1220
        %v1240 = vadd.f32 %v1209, %v1220
        %v1241 = vadd.f32 %v1210, %v1220
        %v1242 = vadd.f32 %v1211, %v1220
        %v1243 = vadd.f32 %v1212, %v1220
        %v1244 = vadd.f32 %v1213, %v1220
        %v1245 = vadd.f32 %v1214, %v1220
        %v1246 = vmax.f32 %v1222, 0.0
        %v1247 = vmax.f32 %v1223, 0.0
        %v1248 = vmax.f32 %v1224, 0.0
        %v1249 = vmax.f32 %v1225, 0.0
        %v1250 = vmax.f32 %v1226, 0.0
        %v1251 = vmax.f32 %v1227, 0.0
        %v1252 = vmax.f32 %v1228, 0.0
        %v1253 = vmax.f32 %v1229, 0.0
        %v1254 = vmax.f32 %v1230, 0.0
        %v1255 = vmax.f32 %v1231, 0.0
        %v1256 = vmax.f32 %v1232, 0.0
        %v1257 = vmax.f32 %v1233, 0.0
        %v1258 = vmax.f32 %v1234, 0.0
        %v1259 = vmax.f32 %v1235, 0.0
        %v1260 = vmax.f32 %v1236, 0.0
        %v1261 = vmax.f32 %v1237, 0.0
        %v1262 = vmax.f32 %v1238, 0.0
        %v1263 = vmax.f32 %v1239, 0.0
        %v1264 = vmax.f32 %v1240, 0.0
        %v1265 = vmax.f32 %v1241, 0.0
        %v1266 = vmax.f32 %v1242, 0.0
        %v1267 = vmax.f32 %v1243, 0.0
        %v1268 = vmax.f32 %v1244, 0.0
        %v1269 = vmax.f32 %v1245, 0.0
        %v1270 = vpack.c.bf16 %v1247, %v1246
        %v1271 = vpack.c.bf16 %v1249, %v1248
        %v1272 = vpack.c.bf16 %v1251, %v1250
        %v1273 = vpack.c.bf16 %v1253, %v1252
        %v1274 = vpack.c.bf16 %v1255, %v1254
        %v1275 = vpack.c.bf16 %v1257, %v1256
        %v1276 = vpack.c.bf16 %v1259, %v1258
        %v1277 = vpack.c.bf16 %v1261, %v1260
        %v1278 = vpack.c.bf16 %v1263, %v1262
        %v1279 = vpack.c.bf16 %v1265, %v1264
        %v1280 = vpack.c.bf16 %v1267, %v1266
        %v1281 = vpack.c.bf16 %v1269, %v1268
        %v1282 = vld [vmem:[#allocation7] sm:$0xf]
        %v1283 = vld [vmem:[#allocation7 + $0x4] sm:$0xf]
        %v1284 = vld [vmem:[#allocation7 + $0x8] sm:$0xf]
        %v1285 = vld [vmem:[#allocation7 + $0xc] sm:$0xf]
        %v1286 = vld [vmem:[#allocation7 + $0x10] sm:$0xf]
        %v1287 = vld [vmem:[#allocation7 + $0x14] sm:$0xf]
        %v1288 = vld [vmem:[#allocation7 + $0x18] sm:$0xf]
        %v1289 = vld [vmem:[#allocation7 + $0x1c] sm:$0xf]
        %v1290 = vld [vmem:[#allocation7 + $0x20] sm:$0xf]
        %v1291 = vld [vmem:[#allocation7 + $0x24] sm:$0xf]
        %v1292 = vld [vmem:[#allocation7 + $0x28] sm:$0xf]
        %v1293 = vld [vmem:[#allocation7 + $0x2c] sm:$0xf]
        %v1294 = vld [vmem:[#allocation7 + $0x30] sm:$0xf]
        %v1295 = vld [vmem:[#allocation7 + $0x34] sm:$0xf]
        %v1296 = vld [vmem:[#allocation7 + $0x38] sm:$0xf]
        %v1297 = vld [vmem:[#allocation7 + $0x3c] sm:$0xf]
        %v1314 = vunpack.c.l.b16 %v1282
        %v1315 = vunpack.c.l.b16 %v1283
        %v1316 = vunpack.c.l.b16 %v1284
        %v1317 = vunpack.c.l.b16 %v1285
        %v1318 = vunpack.c.l.b16 %v1286
        %v1319 = vunpack.c.l.b16 %v1287
        %v1320 = vunpack.c.l.b16 %v1288
        %v1321 = vunpack.c.l.b16 %v1289
        %v1322 = vunpack.c.l.b16 %v1290
        %v1323 = vunpack.c.l.b16 %v1291
        %v1324 = vunpack.c.l.b16 %v1292
        %v1325 = vunpack.c.l.b16 %v1293
        %v1326 = vunpack.c.l.b16 %v1294
        %v1327 = vunpack.c.l.b16 %v1295
        %v1328 = vunpack.c.l.b16 %v1296
        %v1329 = vunpack.c.l.b16 %v1297
        %v1330 = vpack.c.b16 %v1315, %v1314
        %v1331 = vpack.c.b16 %v1317, %v1316
        %v1332 = vpack.c.b16 %v1319, %v1318
        %v1333 = vpack.c.b16 %v1321, %v1320
        %v1334 = vpack.c.b16 %v1323, %v1322
        %v1335 = vpack.c.b16 %v1325, %v1324
        %v1336 = vpack.c.b16 %v1327, %v1326
        %v1337 = vpack.c.b16 %v1329, %v1328
        %1346 = vmatprep.subr.bf16.mxu0 0
        %1347 = vmatpush1.bf16.msra.mxu0 %v1330
        %1348 = vmatprep.subr.bf16.mxu0 0
        %1349 = vmatpush1.bf16.msra.mxu0 %v1331
        %1350 = vmatprep.subr.bf16.mxu0 0
        %1351 = vmatpush1.bf16.msra.mxu0 %v1332
        %1352 = vmatprep.subr.bf16.mxu0 0
        %1353 = vmatpush1.bf16.msra.mxu0 %v1333
        %1354 = vmatprep.subr.bf16.mxu0 0
        %1355 = vmatpush1.bf16.msra.mxu0 %v1334
        %1356 = vmatprep.subr.bf16.mxu0 0
        %1357 = vmatpush1.bf16.msra.mxu0 %v1335
        %1358 = vmatprep.subr.bf16.mxu0 0
        %1359 = vmatpush1.bf16.msra.mxu0 %v1336
        %1360 = vmatprep.subr.bf16.mxu0 0
        %1361 = vmatpush1.bf16.msra.mxu0 %v1337
        %1362 = vmatprep.subr.bf16.mxu0 0
        %1363 = vmatpush1.bf16.msra.mxu0 0
        %1364 = vmatprep.subr.bf16.mxu0 0
        %1365 = vmatpush1.bf16.msra.mxu0 0
        %1366 = vmatprep.subr.bf16.mxu0 0
        %1367 = vmatpush1.bf16.msra.mxu0 0
        %1368 = vmatprep.subr.bf16.mxu0 0
        %1369 = vmatpush1.bf16.msra.mxu0 0
        %1370 = vmatprep.subr.bf16.mxu0 0
        %1371 = vmatpush1.bf16.msra.mxu0 0
        %1372 = vmatprep.subr.bf16.mxu0 0
        %1373 = vmatpush1.bf16.msra.mxu0 0
        %1374 = vmatprep.subr.bf16.mxu0 0
        %1375 = vmatpush1.bf16.msra.mxu0 0
        %1376 = vmatprep.subr.bf16.mxu0 0
        %1377 = vmatpush1.bf16.msra.mxu0 0
        %1378 = vmatprep.mubr.bf16.mxu0 0
        %1379 = vmatmul.mubr.bf16.gmra.mrb[0].mxu0 %v1270
        %v1380 = vpop.f32.mrb[0].mxu0
        %v1381 = vadd.f32 0.0, %v1380
        %v1382 = vpop.f32.mrb[0].mxu0
        %v1383 = vpop.f32.mrb[0].mxu0
        %v1384 = vadd.f32 0.0, %v1383
        %v1385 = vpop.f32.mrb[0].mxu0
        %1386 = vmatprep.mubr.bf16.mxu0 0
        %1387 = vmatmul.mubr.bf16.gmra.mrb[0].mxu0 %v1271
        %v1388 = vpop.f32.mrb[0].mxu0
        %v1389 = vadd.f32 0.0, %v1388
        %v1390 = vpop.f32.mrb[0].mxu0
        %v1391 = vpop.f32.mrb[0].mxu0
        %v1392 = vadd.f32 0.0, %v1391
        %v1393 = vpop.f32.mrb[0].mxu0
        %1394 = vmatprep.mubr.bf16.mxu0 0
        %1395 = vmatmul.mubr.bf16.gmra.mrb[0].mxu0 %v1272
        %v1396 = vpop.f32.mrb[0].mxu0
        %v1397 = vadd.f32 0.0, %v1396
        %v1398 = vpop.f32.mrb[0].mxu0
        %v1399 = vpop.f32.mrb[0].mxu0
        %v1400 = vadd.f32 0.0, %v1399
        %v1401 = vpop.f32.mrb[0].mxu0
        %1402 = vmatprep.mubr.bf16.mxu0 0
        %1403 = vmatmul.mubr.bf16.gmra.mrb[0].mxu0 %v1273
        %v1404 = vpop.f32.mrb[0].mxu0
        %v1405 = vadd.f32 0.0, %v1404
        %v1406 = vpop.f32.mrb[0].mxu0
        %v1407 = vpop.f32.mrb[0].mxu0
        %v1408 = vadd.f32 0.0, %v1407
        %v1409 = vpop.f32.mrb[0].mxu0
        %1410 = vmatprep.mubr.bf16.mxu0 0
        %1411 = vmatmul.mubr.bf16.gmra.mrb[0].mxu0 %v1274
        %v1412 = vpop.f32.mrb[0].mxu0
        %v1413 = vadd.f32 0.0, %v1412
        %v1414 = vpop.f32.mrb[0].mxu0
        %v1415 = vpop.f32.mrb[0].mxu0
        %v1416 = vadd.f32 0.0, %v1415
        %v1417 = vpop.f32.mrb[0].mxu0
        %1418 = vmatprep.mubr.bf16.mxu0 0
        %1419 = vmatmul.mubr.bf16.gmra.mrb[0].mxu0 %v1275
        %v1420 = vpop.f32.mrb[0].mxu0
        %v1421 = vadd.f32 0.0, %v1420
        %v1422 = vpop.f32.mrb[0].mxu0
        %v1423 = vpop.f32.mrb[0].mxu0
        %v1424 = vadd.f32 0.0, %v1423
        %v1425 = vpop.f32.mrb[0].mxu0
        %1426 = vmatprep.mubr.bf16.mxu0 0
        %1427 = vmatmul.mubr.bf16.gmra.mrb[0].mxu0 %v1276
        %v1428 = vpop.f32.mrb[0].mxu0
        %v1429 = vadd.f32 0.0, %v1428
        %v1430 = vpop.f32.mrb[0].mxu0
        %v1431 = vpop.f32.mrb[0].mxu0
        %v1432 = vadd.f32 0.0, %v1431
        %v1433 = vpop.f32.mrb[0].mxu0
        %1434 = vmatprep.mubr.bf16.mxu0 0
        %1435 = vmatmul.mubr.bf16.gmra.mrb[0].mxu0 %v1277
        %v1436 = vpop.f32.mrb[0].mxu0
        %v1437 = vadd.f32 0.0, %v1436
        %v1438 = vpop.f32.mrb[0].mxu0
        %v1439 = vpop.f32.mrb[0].mxu0
        %v1440 = vadd.f32 0.0, %v1439
        %v1441 = vpop.f32.mrb[0].mxu0
        %1442 = vmatprep.mubr.bf16.mxu0 0
        %1443 = vmatmul.mubr.bf16.gmra.mrb[0].mxu0 %v1278
        %v1444 = vpop.f32.mrb[0].mxu0
        %v1445 = vadd.f32 0.0, %v1444
        %v1446 = vpop.f32.mrb[0].mxu0
        %v1447 = vpop.f32.mrb[0].mxu0
        %v1448 = vadd.f32 0.0, %v1447
        %v1449 = vpop.f32.mrb[0].mxu0
        %1450 = vmatprep.mubr.bf16.mxu0 0
        %1451 = vmatmul.mubr.bf16.gmra.mrb[0].mxu0 %v1279
        %v1452 = vpop.f32.mrb[0].mxu0
        %v1453 = vadd.f32 0.0, %v1452
        %v1454 = vpop.f32.mrb[0].mxu0
        %v1455 = vpop.f32.mrb[0].mxu0
        %v1456 = vadd.f32 0.0, %v1455
        %v1457 = vpop.f32.mrb[0].mxu0
        %1458 = vmatprep.mubr.bf16.mxu0 0
        %1459 = vmatmul.mubr.bf16.gmra.mrb[0].mxu0 %v1280
        %v1460 = vpop.f32.mrb[0].mxu0
        %v1461 = vadd.f32 0.0, %v1460
        %v1462 = vpop.f32.mrb[0].mxu0
        %v1463 = vpop.f32.mrb[0].mxu0
        %v1464 = vadd.f32 0.0, %v1463
        %v1465 = vpop.f32.mrb[0].mxu0
        %1466 = vmatprep.mubr.bf16.mxu0 0
        %1467 = vmatmul.mubr.bf16.gmra.mrb[0].mxu0 %v1281
        %v1468 = vpop.f32.mrb[0].mxu0
        %v1469 = vadd.f32 0.0, %v1468
        %v1470 = vpop.f32.mrb[0].mxu0
        %v1471 = vpop.f32.mrb[0].mxu0
        %v1472 = vadd.f32 0.0, %v1471
        %v1473 = vpop.f32.mrb[0].mxu0
        %1474 = vdwg.mxu0
        %v1475 = vld [vmem:[%s4] sm:$0x1]
        %v1477 = vlaneseq
        %v1478 = vshrl.u32 %v1477, 7
        %v1479 = vsub.s32 0, %v1478
        %v1480 = vrot.slane %v1475, %v1479
        %v1482 = vmul.f32 %v1381, %v1480
        %v1483 = vmul.f32 %v1384, %v1480
        %v1484 = vmul.f32 %v1389, %v1480
        %v1485 = vmul.f32 %v1392, %v1480
        %v1486 = vmul.f32 %v1397, %v1480
        %v1487 = vmul.f32 %v1400, %v1480
        %v1488 = vmul.f32 %v1405, %v1480
        %v1489 = vmul.f32 %v1408, %v1480
        %v1490 = vmul.f32 %v1413, %v1480
        %v1491 = vmul.f32 %v1416, %v1480
        %v1492 = vmul.f32 %v1421, %v1480
        %v1493 = vmul.f32 %v1424, %v1480
        %v1494 = vmul.f32 %v1429, %v1480
        %v1495 = vmul.f32 %v1432, %v1480
        %v1496 = vmul.f32 %v1437, %v1480
        %v1497 = vmul.f32 %v1440, %v1480
        %v1498 = vmul.f32 %v1445, %v1480
        %v1499 = vmul.f32 %v1448, %v1480
        %v1500 = vmul.f32 %v1453, %v1480
        %v1501 = vmul.f32 %v1456, %v1480
        %v1502 = vmul.f32 %v1461, %v1480
        %v1503 = vmul.f32 %v1464, %v1480
        %v1504 = vmul.f32 %v1469, %v1480
        %v1505 = vmul.f32 %v1472, %v1480
        %v1506 = vld [vmem:[%s5] sm:$0x1]
        %v1508 = vlaneseq
        %v1509 = vshrl.u32 %v1508, 7
        %v1510 = vsub.s32 0, %v1509
        %v1511 = vrot.slane %v1506, %v1510
        %v1513 = vadd.f32 %v1482, %v1511
        %v1514 = vadd.f32 %v1483, %v1511
        %v1515 = vadd.f32 %v1484, %v1511
        %v1516 = vadd.f32 %v1485, %v1511
        %v1517 = vadd.f32 %v1486, %v1511
        %v1518 = vadd.f32 %v1487, %v1511
        %v1519 = vadd.f32 %v1488, %v1511
        %v1520 = vadd.f32 %v1489, %v1511
        %v1521 = vadd.f32 %v1490, %v1511
        %v1522 = vadd.f32 %v1491, %v1511
        %v1523 = vadd.f32 %v1492, %v1511
        %v1524 = vadd.f32 %v1493, %v1511
        %v1525 = vadd.f32 %v1494, %v1511
        %v1526 = vadd.f32 %v1495, %v1511
        %v1527 = vadd.f32 %v1496, %v1511
        %v1528 = vadd.f32 %v1497, %v1511
        %v1529 = vadd.f32 %v1498, %v1511
        %v1530 = vadd.f32 %v1499, %v1511
        %v1531 = vadd.f32 %v1500, %v1511
        %v1532 = vadd.f32 %v1501, %v1511
        %v1533 = vadd.f32 %v1502, %v1511
        %v1534 = vadd.f32 %v1503, %v1511
        %v1535 = vadd.f32 %v1504, %v1511
        %v1536 = vadd.f32 %v1505, %v1511
        %v1537 = vpack.c.bf16 %v1514, %v1513
        %v1538 = vpack.c.bf16 %v1516, %v1515
        %v1539 = vpack.c.bf16 %v1518, %v1517
        %v1540 = vpack.c.bf16 %v1520, %v1519
        %v1541 = vpack.c.bf16 %v1522, %v1521
        %v1542 = vpack.c.bf16 %v1524, %v1523
        %v1543 = vpack.c.bf16 %v1526, %v1525
        %v1544 = vpack.c.bf16 %v1528, %v1527
        %v1545 = vpack.c.bf16 %v1530, %v1529
        %v1546 = vpack.c.bf16 %v1532, %v1531
        %v1547 = vpack.c.bf16 %v1534, %v1533
        %v1548 = vpack.c.bf16 %v1536, %v1535
        %v1561 = vunpack.c.l.b16 %v1537
        %v1562 = vunpack.c.h.b16 %v1537
        %v1563 = vunpack.c.l.b16 %v1538
        %v1564 = vunpack.c.h.b16 %v1538
        %v1565 = vunpack.c.l.b16 %v1539
        %v1566 = vunpack.c.h.b16 %v1539
        %v1567 = vunpack.c.l.b16 %v1540
        %v1568 = vunpack.c.h.b16 %v1540
        %v1569 = vunpack.c.l.b16 %v1541
        %v1570 = vunpack.c.h.b16 %v1541
        %v1571 = vunpack.c.l.b16 %v1542
        %v1572 = vunpack.c.h.b16 %v1542
        %v1573 = vunpack.c.l.b16 %v1543
        %v1574 = vunpack.c.h.b16 %v1543
        %v1575 = vunpack.c.l.b16 %v1544
        %v1576 = vunpack.c.h.b16 %v1544
        %v1577 = vunpack.c.l.b16 %v1545
        %v1578 = vunpack.c.h.b16 %v1545
        %v1579 = vunpack.c.l.b16 %v1546
        %v1580 = vunpack.c.h.b16 %v1546
        %v1581 = vunpack.c.l.b16 %v1547
        %v1582 = vunpack.c.h.b16 %v1547
        %v1583 = vunpack.c.l.b16 %v1548
        %v1584 = vunpack.c.h.b16 %v1548
        %v1585 = vpack.c.b16 %v1561, %v1561
        %v1586 = vpack.c.b16 %v1562, %v1562
        %v1587 = vpack.c.b16 %v1563, %v1563
        %v1588 = vpack.c.b16 %v1564, %v1564
        %v1589 = vpack.c.b16 %v1565, %v1565
        %v1590 = vpack.c.b16 %v1566, %v1566
        %v1591 = vpack.c.b16 %v1567, %v1567
        %v1592 = vpack.c.b16 %v1568, %v1568
        %v1593 = vpack.c.b16 %v1569, %v1569
        %v1594 = vpack.c.b16 %v1570, %v1570
        %v1595 = vpack.c.b16 %v1571, %v1571
        %v1596 = vpack.c.b16 %v1572, %v1572
        %v1597 = vpack.c.b16 %v1573, %v1573
        %v1598 = vpack.c.b16 %v1574, %v1574
        %v1599 = vpack.c.b16 %v1575, %v1575
        %v1600 = vpack.c.b16 %v1576, %v1576
        %v1601 = vpack.c.b16 %v1577, %v1577
        %v1602 = vpack.c.b16 %v1578, %v1578
        %v1603 = vpack.c.b16 %v1579, %v1579
        %v1604 = vpack.c.b16 %v1580, %v1580
        %v1605 = vpack.c.b16 %v1581, %v1581
        %v1606 = vpack.c.b16 %v1582, %v1582
        %v1607 = vpack.c.b16 %v1583, %v1583
        %v1608 = vpack.c.b16 %v1584, %v1584
        %1633 = vst [vmem:[%s316] sm:$0xf] %v1585
        %1634 = vst [vmem:[%s316 + $0x4] sm:$0xf] %v1586
        %1635 = vst [vmem:[%s316 + $0x8] sm:$0xf] %v1587
        %1636 = vst [vmem:[%s316 + $0xc] sm:$0xf] %v1588
        %1637 = vst [vmem:[%s316 + $0x10] sm:$0xf] %v1589
        %1638 = vst [vmem:[%s316 + $0x14] sm:$0xf] %v1590
        %1639 = vst [vmem:[%s316 + $0x18] sm:$0xf] %v1591
        %1640 = vst [vmem:[%s316 + $0x1c] sm:$0xf] %v1592
        %1641 = vst [vmem:[%s316 + $0x20] sm:$0xf] %v1593
        %1642 = vst [vmem:[%s316 + $0x24] sm:$0xf] %v1594
        %1643 = vst [vmem:[%s316 + $0x28] sm:$0xf] %v1595
        %1644 = vst [vmem:[%s316 + $0x2c] sm:$0xf] %v1596
        %1645 = vst [vmem:[%s316 + $0x30] sm:$0xf] %v1597
        %1646 = vst [vmem:[%s316 + $0x34] sm:$0xf] %v1598
        %1647 = vst [vmem:[%s316 + $0x38] sm:$0xf] %v1599
        %1648 = vst [vmem:[%s316 + $0x3c] sm:$0xf] %v1600
        %1649 = vst [vmem:[%s316 + $0x40] sm:$0xf] %v1601
        %1650 = vst [vmem:[%s316 + $0x44] sm:$0xf] %v1602
        %1651 = vst [vmem:[%s316 + $0x48] sm:$0xf] %v1603
        %1652 = vst [vmem:[%s316 + $0x4c] sm:$0xf] %v1604
        %1653 = vst [vmem:[%s316 + $0x50] sm:$0xf] %v1605
        %1654 = vst [vmem:[%s316 + $0x54] sm:$0xf] %v1606
        %1655 = vst [vmem:[%s316 + $0x58] sm:$0xf] %v1607
        %1656 = vst [vmem:[%s316 + $0x5c] sm:$0xf] %v1608
        %s1657 = sand.u32 %s179, 1
        %s1658 = scalar_lea.sflag [#allocation4], %s1657
        %s1659 = sand.u32 %s179, 1
        %s1660 = smul.addr %s1659, 96
        %s1661 = scalar_lea.vmem [#allocation8], %s1660
        // Predicated region
        $region57: #{tpu_custom_call.1} parent=43 // pred_check
          %p1662 = pneg %p189
        $region58: #{tpu_custom_call.1} parent=43 // pred_check_branch
          %1664 = sbr.rel (%p1662) target = $region60
        $region59: #{tpu_custom_call.1} parent=43 // pred_region
          %s1665 = smul.u32 4, %s29
          %s1667 = ssub.s32 1536, 1536
          %1668 = vsyncadd %s1658, %s1667
          %s1669 = smul.addr %s28, 24
          %s1670 = sadd.s32 %s1665, %s1669
          %s1671 = smul.addr %s1670, 64
          %s1672 = scalar_lea.hbm %s6, %s1671
          %s1673 = sshll.u32 %s1661, 4
          %s1674 = int_to_ptr.vmem [resolvable:$true] %s1673
          %1679 = dma.vmem_to_hbm [thread:$0]  %s1674, 1536, %s1672, %s1658, 64, 64, 4
        $region60: #{tpu_custom_call.1} parent=43 // pred_fallthru
          _
      $region44: #{tpu_custom_call.1} parent=5 // pred_fallthru
        _
      %p1680 = scmp.le.s32.totalorder 2, %s19
      // Predicated region
      $region61: #{tpu_custom_call.1} parent=5 // pred_check
        %p1681 = pneg %p1680
      $region62: #{tpu_custom_call.1} parent=5 // pred_check_branch
        %1683 = sbr.rel (%p1681) target = $region64
      $region63: #{tpu_custom_call.1} parent=5 // pred_region
        %s1684 = ssub.s32 %s19, 2
        // Predicated region
        $region65: #{tpu_custom_call.1} parent=63 // pred_check
          %p1685 = pneg %p195
        $region66: #{tpu_custom_call.1} parent=63 // pred_check_branch
          %1687 = sbr.rel (%p1685) target = $region68
        $region67: #{tpu_custom_call.1} parent=63 // pred_region
          %s1688 = sand.u32 %s180, 1
          %s1689 = scalar_lea.sflag [#allocation4], %s1688
          %s1690 = sand.u32 %s180, 1
          %s1691 = smul.addr %s1690, 96
          %s1692 = scalar_lea.vmem [#allocation8], %s1691
          %1693 = dma.done %s1689, 1536
        $region68: #{tpu_custom_call.1} parent=63 // pred_fallthru
          _
      $region64: #{tpu_custom_call.1} parent=5 // pred_fallthru
        _
    $region6: #{tpu_custom_call.1} parent=1 // loop_footer
      %s23 = sadd.s32 1, %s19
    $region7: #{tpu_custom_call.1} parent=1 // loop_footer_branch
      %18 = sbr.rel target = $region3
    $region8: #{tpu_custom_call.1} parent=1 // loop_exit
      _
    %1694 = vsyncpa [#allocation3], 1
    %s1695 = scalar_lea.sflag [#allocation3], 1
    %1696 = vsyncpa %s1695, 1
    %1697 = vsyncpa [#allocation6], 1
    %1698 = vsyncpa [#allocation4], 1
    %s1699 = scalar_lea.sflag [#allocation4], 1
    %1700 = vsyncpa %s1699, 1

</llo_original>
